<compile_context>
chip_gen: v5e
topology: v5e:2x2
jax: 0.10.0
libtpu: 0.0.40
codegen_flags: <defaults>
</compile_context>

<pallas_src>
import functools

import jax
import jax.numpy as jnp
from jax.experimental import pallas as pl
from jax.experimental.pallas import tpu as pltpu


def _layer_norm(y, w, b, eps=1e-5):
    # One-pass statistics: E[x], E[x^2] -> var = E[x^2] - E[x]^2.
    inv_d = 1.0 / y.shape[-1]
    mean = jnp.sum(y, axis=-1, keepdims=True) * inv_d
    mean_sq = jnp.sum(y * y, axis=-1, keepdims=True) * inv_d
    var = mean_sq - mean * mean
    return (y - mean) * jax.lax.rsqrt(var + eps) * w + b


def encoder_kernel(
    x_ref,
    wq_ref, bq_ref, wk_ref, bk_ref, wv_ref, bv_ref,
    wo_ref, bo_ref, ln1w_ref, ln1b_ref,
    w1_ref, b1_ref, w2_ref, b2_ref, ln2w_ref, ln2b_ref,
    out_ref,
    act_ref,
    *, n_head, d_k, d_v,
):
    layer = pl.program_id(1)

    # Load the input activation into the resident VMEM scratch at layer 0.
    @pl.when(layer == 0)
    def _():
        act_ref[...] = x_ref[...].astype(jnp.float32)

    x = act_ref[...]                       # [S, D] f32, resident across layers
    S = x.shape[0]
    inv_temp = 1.0 / (float(d_k) ** 0.5)

    # QKV projections; weights are pre-transposed to [in, out] (no .T here).
    # Fold the 1/sqrt(d_k) attention scale into q (one multiply).
    q = (jnp.dot(x, wq_ref[...], preferred_element_type=jnp.float32)
         + bq_ref[...]) * inv_temp
    k = jnp.dot(x, wk_ref[...], preferred_element_type=jnp.float32) + bk_ref[...]
    v = jnp.dot(x, wv_ref[...], preferred_element_type=jnp.float32) + bv_ref[...]

    # Batched per-head scaled-dot-product attention (single contraction,
    # no Python head loop, no concatenate).
    qh = q.reshape(S, n_head, d_k)
    kh = k.reshape(S, n_head, d_k)
    vh = v.reshape(S, n_head, d_v)
    scores = jnp.einsum('shd,thd->hst', qh, kh,
                        preferred_element_type=jnp.float32)      # [H, S, S]
    scores = scores - jnp.max(scores, axis=-1, keepdims=True)
    p = jnp.exp(scores)
    denom = jnp.sum(p, axis=-1, keepdims=True)
    sfm = p * pl.reciprocal(denom, approx=True)
    ctx = jnp.einsum('hst,thd->shd', sfm, vh,
                     preferred_element_type=jnp.float32)          # [S, H, d_v]
    ctx = ctx.reshape(S, n_head * d_v)

    # Output projection + residual + LayerNorm.
    proj = jnp.dot(ctx, wo_ref[...], preferred_element_type=jnp.float32) + bo_ref[...]
    y = _layer_norm(proj + x, ln1w_ref[...], ln1b_ref[...])

    # Positionwise FFN: Conv1d(kernel=1) == per-position Linear.
    h1 = jnp.maximum(
        jnp.dot(y, w1_ref[...], preferred_element_type=jnp.float32) + b1_ref[...],
        0.0)
    h2 = jnp.dot(h1, w2_ref[...], preferred_element_type=jnp.float32) + b2_ref[...]
    z = _layer_norm(h2 + y, ln2w_ref[...], ln2b_ref[...])

    # Keep activation resident for the next layer.
    act_ref[...] = z

    @pl.when(layer == pl.num_programs(1) - 1)
    def _():
        out_ref[...] = z.astype(out_ref.dtype)


def encoder_forward(x, params, *, n_head, d_k, d_v):
    """Fused Encoder.forward (enc_mask=None, return_attns=False, norm=True).

    x: [B, S, D].  params: tuple of 16 arrays, each with a leading n_layers
    axis; weights are [n_layers, in, out], biases / LN params [n_layers, 1, N].
    """
    B, S, D = x.shape
    n_layers = int(params[0].shape[0])
    d_inner = int(params[11].shape[-1])

    # Activation tiles: one [S, D] slab per batch element per step (batch dim
    # squeezed via None).  Weights: one layer's full-extent slab per step.
    in_specs = [pl.BlockSpec((None, S, D), lambda b, l: (b, 0, 0))]
    for p in params:
        in_specs.append(
            pl.BlockSpec((None,) + tuple(p.shape[1:]), lambda b, l: (l, 0, 0)))
    out_spec = pl.BlockSpec((None, S, D), lambda b, l: (b, 0, 0))

    # Advisory cost estimate (6 matmuls + attention per layer per batch elem).
    flops_per_layer = (
        2 * S * D * (n_head * d_k) * 2        # Q, K projections
        + 2 * S * D * (n_head * d_v)          # V projection
        + 2 * n_head * S * S * d_k            # scores
        + 2 * n_head * S * S * d_v            # context
        + 2 * S * (n_head * d_v) * D          # output projection
        + 4 * S * D * d_inner                 # FFN (two matmuls)
    )
    param_bytes = sum(int(p.size) * p.dtype.itemsize for p in params)
    cost = pl.CostEstimate(
        flops=int(B * n_layers * flops_per_layer),
        transcendentals=int(B * n_layers * n_head * S * S),
        bytes_accessed=int(2 * x.size * x.dtype.itemsize + param_bytes),
    )

    kernel = functools.partial(encoder_kernel, n_head=n_head, d_k=d_k, d_v=d_v)
    return pl.pallas_call(
        kernel,
        out_shape=jax.ShapeDtypeStruct((B, S, D), x.dtype),
        grid_spec=pltpu.PrefetchScalarGridSpec(
            num_scalar_prefetch=0,
            grid=(B, n_layers),
            in_specs=in_specs,
            out_specs=out_spec,
            scratch_shapes=[pltpu.VMEM((S, D), jnp.float32)],
        ),
        compiler_params=pltpu.CompilerParams(
            dimension_semantics=("parallel", "arbitrary")),
        cost_estimate=cost,
    )(x, *params)


def init_layer_params(key, d_model, d_inner, n_head, d_k, d_v):
    ks = jax.random.split(key, 6)
    f32 = jnp.float32

    def lin_t(k, out_f, in_f, std):
        # PyTorch stores Linear / Conv1d(kernel=1) weights as [out, in];
        # pre-transpose to [in, out] so the kernel computes x @ W directly.
        return (jax.random.normal(k, (out_f, in_f), f32) * std).T

    wq = lin_t(ks[0], n_head * d_k, d_model, (2.0 / (d_model + d_k)) ** 0.5)
    wk = lin_t(ks[1], n_head * d_k, d_model, (2.0 / (d_model + d_k)) ** 0.5)
    wv = lin_t(ks[2], n_head * d_v, d_model, (2.0 / (d_model + d_v)) ** 0.5)
    wo = lin_t(ks[3], d_model, n_head * d_v, 0.05)
    w1 = lin_t(ks[4], d_inner, d_model, 0.05)   # Conv1d(d_model, d_inner, 1)
    w2 = lin_t(ks[5], d_model, d_inner, 0.05)   # Conv1d(d_inner, d_model, 1)

    zeros = lambda n: jnp.zeros((1, n), f32)
    ones = lambda n: jnp.ones((1, n), f32)

    # Order matches encoder_kernel's ref arguments.
    return (
        wq, zeros(n_head * d_k),
        wk, zeros(n_head * d_k),
        wv, zeros(n_head * d_v),
        wo, zeros(d_model),
        ones(d_model), zeros(d_model),        # LayerNorm after attention
        w1, zeros(d_inner),
        w2, zeros(d_model),
        ones(d_model), zeros(d_model),        # LayerNorm after FFN
    )


def init_encoder_params(key, n_layers, d_model, d_inner, n_head, d_k, d_v):
    keys = jax.random.split(key, n_layers)
    per_layer = [init_layer_params(k, d_model, d_inner, n_head, d_k, d_v)
                 for k in keys]
    n_fields = len(per_layer[0])
    # Stack each parameter across layers on a leading layer axis.
    return tuple(jnp.stack([lp[i] for lp in per_layer], axis=0)
                 for i in range(n_fields))


if __name__ == "__main__":
    # Small shapes consistent with the module.
    n_layers = 2
    n_head = 2
    d_k = 16
    d_v = 16
    d_model = 32
    d_inner = 64
    B, S = 2, 8

    root = jax.random.PRNGKey(0)
    kx, kparams = jax.random.split(root)

    x = jax.random.normal(kx, (B, S, d_model), jnp.float32)
    params = init_encoder_params(kparams, n_layers, d_model, d_inner,
                                 n_head, d_k, d_v)

    out = encoder_forward(x, params, n_head=n_head, d_k=d_k, d_v=d_v)
    out = jax.block_until_ready(out)
    assert out.shape == (B, S, d_model)
    assert bool(jnp.all(jnp.isfinite(out)))
    print("KERNEL_OK")
</pallas_src>

<mosaic_0001>
module attributes {stable_mosaic.version = 11 : i64} {
  func.func @encoder_kernel(%arg0: i32, %arg1: i32, %arg2: memref<1x8x32xf32, #tpu.memory_space<vmem>>, %arg3: memref<1x32x32xf32, #tpu.memory_space<vmem>>, %arg4: memref<1x1x32xf32, #tpu.memory_space<vmem>>, %arg5: memref<1x32x32xf32, #tpu.memory_space<vmem>>, %arg6: memref<1x1x32xf32, #tpu.memory_space<vmem>>, %arg7: memref<1x32x32xf32, #tpu.memory_space<vmem>>, %arg8: memref<1x1x32xf32, #tpu.memory_space<vmem>>, %arg9: memref<1x32x32xf32, #tpu.memory_space<vmem>>, %arg10: memref<1x1x32xf32, #tpu.memory_space<vmem>>, %arg11: memref<1x1x32xf32, #tpu.memory_space<vmem>>, %arg12: memref<1x1x32xf32, #tpu.memory_space<vmem>>, %arg13: memref<1x32x64xf32, #tpu.memory_space<vmem>>, %arg14: memref<1x1x64xf32, #tpu.memory_space<vmem>>, %arg15: memref<1x64x32xf32, #tpu.memory_space<vmem>>, %arg16: memref<1x1x32xf32, #tpu.memory_space<vmem>>, %arg17: memref<1x1x32xf32, #tpu.memory_space<vmem>>, %arg18: memref<1x1x32xf32, #tpu.memory_space<vmem>>, %arg19: memref<1x8x32xf32, #tpu.memory_space<vmem>>, %arg20: memref<8x32xf32, #tpu.memory_space<vmem>>) attributes {dimension_semantics = [#tpu.dimension_semantics<parallel>, #tpu.dimension_semantics<arbitrary>], iteration_bounds = array<i64: 2, 2>, scalar_prefetch = 0 : i64, scratch_operands = 1 : i64, tpu.core_type = #tpu.core_type<tc>, window_params = [{transform_indices = @transform_0, window_bounds = array<i64: 1, 8, 32>}, {transform_indices = @transform_1, window_bounds = array<i64: 1, 32, 32>}, {transform_indices = @transform_2, window_bounds = array<i64: 1, 1, 32>}, {transform_indices = @transform_3, window_bounds = array<i64: 1, 32, 32>}, {transform_indices = @transform_4, window_bounds = array<i64: 1, 1, 32>}, {transform_indices = @transform_5, window_bounds = array<i64: 1, 32, 32>}, {transform_indices = @transform_6, window_bounds = array<i64: 1, 1, 32>}, {transform_indices = @transform_7, window_bounds = array<i64: 1, 32, 32>}, {transform_indices = @transform_8, window_bounds = array<i64: 1, 1, 32>}, {transform_indices = @transform_9, window_bounds = array<i64: 1, 1, 32>}, {transform_indices = @transform_10, window_bounds = array<i64: 1, 1, 32>}, {transform_indices = @transform_11, window_bounds = array<i64: 1, 32, 64>}, {transform_indices = @transform_12, window_bounds = array<i64: 1, 1, 64>}, {transform_indices = @transform_13, window_bounds = array<i64: 1, 64, 32>}, {transform_indices = @transform_14, window_bounds = array<i64: 1, 1, 32>}, {transform_indices = @transform_15, window_bounds = array<i64: 1, 1, 32>}, {transform_indices = @transform_16, window_bounds = array<i64: 1, 1, 32>}, {transform_indices = @transform_17, window_bounds = array<i64: 1, 8, 32>}]} {
    %c0_i32 = arith.constant 0 : i32
    %0 = arith.cmpi eq, %arg1, %c0_i32 : i32
    %1 = arith.extui %0 : i1 to i32
    %c0_i32_0 = arith.constant 0 : i32
    %2 = arith.cmpi ne, %1, %c0_i32_0 : i32
    scf.if %2 {
      %c0_74 = arith.constant 0 : index
      %c0_75 = arith.constant 0 : index
      %c0_76 = arith.constant 0 : index
      %125 = vector.load %arg2[%c0_74, %c0_75, %c0_76] : memref<1x8x32xf32, #tpu.memory_space<vmem>>, vector<1x8x32xf32>
      %126 = vector.shape_cast %125 : vector<1x8x32xf32> to vector<8x32xf32>
      %c0_77 = arith.constant 0 : index
      %c0_78 = arith.constant 0 : index
      %127 = vector.load %arg20[%c0_77, %c0_78] : memref<8x32xf32, #tpu.memory_space<vmem>>, vector<8x32xf32>
      tpu.vector_store %arg20[%c0_77, %c0_78], %126 {strides = array<i32>} : memref<8x32xf32, #tpu.memory_space<vmem>>, vector<8x32xf32>,
    } else {
    }
    %c0 = arith.constant 0 : index
    %c0_1 = arith.constant 0 : index
    %3 = vector.load %arg20[%c0, %c0_1] : memref<8x32xf32, #tpu.memory_space<vmem>>, vector<8x32xf32>
    %c0_2 = arith.constant 0 : index
    %c0_3 = arith.constant 0 : index
    %c0_4 = arith.constant 0 : index
    %4 = vector.load %arg3[%c0_2, %c0_3, %c0_4] : memref<1x32x32xf32, #tpu.memory_space<vmem>>, vector<1x32x32xf32>
    %5 = vector.shape_cast %4 : vector<1x32x32xf32> to vector<32x32xf32>
    %cst = arith.constant dense<0.000000e+00> : vector<8x32xf32>
    %6 = tpu.matmul %3, %5, %cst {dimension_numbers = #tpu.dot_dimension_numbers<[1], [0], [0], [1], [0, 0, 1, 1], [], []>} : vector<8x32xf32>, vector<32x32xf32>, vector<8x32xf32> -> vector<8x32xf32>
    %c0_5 = arith.constant 0 : index
    %c0_6 = arith.constant 0 : index
    %c0_7 = arith.constant 0 : index
    %7 = vector.load %arg4[%c0_5, %c0_6, %c0_7] : memref<1x1x32xf32, #tpu.memory_space<vmem>>, vector<1x1x32xf32>
    %8 = vector.shape_cast %7 : vector<1x1x32xf32> to vector<1x32xf32>
    %9 = vector.broadcast %8 : vector<1x32xf32> to vector<8x32xf32>
    %10 = arith.addf %6, %9 : vector<8x32xf32>
    %cst_8 = arith.constant 2.500000e-01 : f32
    %11 = vector.broadcast %cst_8 : f32 to vector<8x32xf32>
    %12 = arith.mulf %10, %11 : vector<8x32xf32>
    %c0_9 = arith.constant 0 : index
    %c0_10 = arith.constant 0 : index
    %c0_11 = arith.constant 0 : index
    %13 = vector.load %arg5[%c0_9, %c0_10, %c0_11] : memref<1x32x32xf32, #tpu.memory_space<vmem>>, vector<1x32x32xf32>
    %14 = vector.shape_cast %13 : vector<1x32x32xf32> to vector<32x32xf32>
    %cst_12 = arith.constant dense<0.000000e+00> : vector<8x32xf32>
    %15 = tpu.matmul %3, %14, %cst_12 {dimension_numbers = #tpu.dot_dimension_numbers<[1], [0], [0], [1], [0, 0, 1, 1], [], []>} : vector<8x32xf32>, vector<32x32xf32>, vector<8x32xf32> -> vector<8x32xf32>
    %c0_13 = arith.constant 0 : index
    %c0_14 = arith.constant 0 : index
    %c0_15 = arith.constant 0 : index
    %16 = vector.load %arg6[%c0_13, %c0_14, %c0_15] : memref<1x1x32xf32, #tpu.memory_space<vmem>>, vector<1x1x32xf32>
    %17 = vector.shape_cast %16 : vector<1x1x32xf32> to vector<1x32xf32>
    %18 = vector.broadcast %17 : vector<1x32xf32> to vector<8x32xf32>
    %19 = arith.addf %15, %18 : vector<8x32xf32>
    %c0_16 = arith.constant 0 : index
    %c0_17 = arith.constant 0 : index
    %c0_18 = arith.constant 0 : index
    %20 = vector.load %arg7[%c0_16, %c0_17, %c0_18] : memref<1x32x32xf32, #tpu.memory_space<vmem>>, vector<1x32x32xf32>
    %21 = vector.shape_cast %20 : vector<1x32x32xf32> to vector<32x32xf32>
    %cst_19 = arith.constant dense<0.000000e+00> : vector<8x32xf32>
    %22 = tpu.matmul %3, %21, %cst_19 {dimension_numbers = #tpu.dot_dimension_numbers<[1], [0], [0], [1], [0, 0, 1, 1], [], []>} : vector<8x32xf32>, vector<32x32xf32>, vector<8x32xf32> -> vector<8x32xf32>
    %c0_20 = arith.constant 0 : index
    %c0_21 = arith.constant 0 : index
    %c0_22 = arith.constant 0 : index
    %23 = vector.load %arg8[%c0_20, %c0_21, %c0_22] : memref<1x1x32xf32, #tpu.memory_space<vmem>>, vector<1x1x32xf32>
    %24 = vector.shape_cast %23 : vector<1x1x32xf32> to vector<1x32xf32>
    %25 = vector.broadcast %24 : vector<1x32xf32> to vector<8x32xf32>
    %26 = arith.addf %22, %25 : vector<8x32xf32>
    %27 = vector.shape_cast %12 : vector<8x32xf32> to vector<8x2x16xf32>
    %28 = vector.shape_cast %19 : vector<8x32xf32> to vector<8x2x16xf32>
    %29 = vector.shape_cast %26 : vector<8x32xf32> to vector<8x2x16xf32>
    "tpu.trace_start"() <{level = 10 : i32, message = "shd,thd->hst"}> : () -> ()
    %cst_23 = arith.constant dense<0.000000e+00> : vector<2x8x8xf32>
    %30 = tpu.matmul %27, %28, %cst_23 {dimension_numbers = #tpu.dot_dimension_numbers<[2], [2], [0], [0], [0, 1, 0, 0, 1, 0], [1], [1]>} : vector<8x2x16xf32>, vector<8x2x16xf32>, vector<2x8x8xf32> -> vector<2x8x8xf32>
    "tpu.trace_stop"() : () -> ()
    %cst_24 = arith.constant dense<0xFF800000> : vector<2x8xf32>
    %31 = vector.multi_reduction <maximumf>, %30, %cst_24 [2] : vector<2x8x8xf32> to vector<2x8xf32>
    %32 = vector.shape_cast %31 : vector<2x8xf32> to vector<2x8x1xf32>
    %33 = vector.broadcast %32 : vector<2x8x1xf32> to vector<2x8x8xf32>
    %34 = arith.subf %30, %33 : vector<2x8x8xf32>
    %35 = math.exp %34 : vector<2x8x8xf32>
    %cst_25 = arith.constant dense<0.000000e+00> : vector<2x8xf32>
    %36 = vector.multi_reduction <add>, %35, %cst_25 [2] : vector<2x8x8xf32> to vector<2x8xf32>
    %37 = vector.shape_cast %36 : vector<2x8xf32> to vector<2x8x1xf32>
    %38 = tpu.reciprocal %37 {approx = true} : vector<2x8x1xf32> -> vector<2x8x1xf32>
    %39 = vector.broadcast %38 : vector<2x8x1xf32> to vector<2x8x8xf32>
    %40 = arith.mulf %35, %39 : vector<2x8x8xf32>
    "tpu.trace_start"() <{level = 10 : i32, message = "hst,thd->shd"}> : () -> ()
    %cst_26 = arith.constant dense<0.000000e+00> : vector<2x16x8xf32>
    %41 = tpu.matmul %29, %40, %cst_26 {dimension_numbers = #tpu.dot_dimension_numbers<[0], [2], [2], [1], [0, 1, 0, 2, 1, 1], [1], [0]>} : vector<8x2x16xf32>, vector<2x8x8xf32>, vector<2x16x8xf32> -> vector<2x16x8xf32>
    %42 = tpu.transpose %41, [2, 0, 1] : vector<2x16x8xf32> -> vector<8x2x16xf32>
    "tpu.trace_stop"() : () -> ()
    %43 = vector.shape_cast %42 : vector<8x2x16xf32> to vector<8x32xf32>
    %c0_27 = arith.constant 0 : index
    %c0_28 = arith.constant 0 : index
    %c0_29 = arith.constant 0 : index
    %44 = vector.load %arg9[%c0_27, %c0_28, %c0_29] : memref<1x32x32xf32, #tpu.memory_space<vmem>>, vector<1x32x32xf32>
    %45 = vector.shape_cast %44 : vector<1x32x32xf32> to vector<32x32xf32>
    %cst_30 = arith.constant dense<0.000000e+00> : vector<8x32xf32>
    %46 = tpu.matmul %43, %45, %cst_30 {dimension_numbers = #tpu.dot_dimension_numbers<[1], [0], [0], [1], [0, 0, 1, 1], [], []>} : vector<8x32xf32>, vector<32x32xf32>, vector<8x32xf32> -> vector<8x32xf32>
    %c0_31 = arith.constant 0 : index
    %c0_32 = arith.constant 0 : index
    %c0_33 = arith.constant 0 : index
    %47 = vector.load %arg10[%c0_31, %c0_32, %c0_33] : memref<1x1x32xf32, #tpu.memory_space<vmem>>, vector<1x1x32xf32>
    %48 = vector.shape_cast %47 : vector<1x1x32xf32> to vector<1x32xf32>
    %49 = vector.broadcast %48 : vector<1x32xf32> to vector<8x32xf32>
    %50 = arith.addf %46, %49 : vector<8x32xf32>
    %51 = arith.addf %50, %3 : vector<8x32xf32>
    %c0_34 = arith.constant 0 : index
    %c0_35 = arith.constant 0 : index
    %c0_36 = arith.constant 0 : index
    %52 = vector.load %arg11[%c0_34, %c0_35, %c0_36] : memref<1x1x32xf32, #tpu.memory_space<vmem>>, vector<1x1x32xf32>
    %53 = vector.shape_cast %52 : vector<1x1x32xf32> to vector<1x32xf32>
    %c0_37 = arith.constant 0 : index
    %c0_38 = arith.constant 0 : index
    %c0_39 = arith.constant 0 : index
    %54 = vector.load %arg12[%c0_37, %c0_38, %c0_39] : memref<1x1x32xf32, #tpu.memory_space<vmem>>, vector<1x1x32xf32>
    %55 = vector.shape_cast %54 : vector<1x1x32xf32> to vector<1x32xf32>
    %cst_40 = arith.constant dense<0.000000e+00> : vector<8xf32>
    %56 = vector.multi_reduction <add>, %51, %cst_40 [1] : vector<8x32xf32> to vector<8xf32>
    %57 = vector.shape_cast %56 : vector<8xf32> to vector<8x1xf32>
    %cst_41 = arith.constant 3.125000e-02 : f32
    %58 = vector.broadcast %cst_41 : f32 to vector<8x1xf32>
    %59 = arith.mulf %57, %58 : vector<8x1xf32>
    %60 = arith.mulf %51, %51 : vector<8x32xf32>
    %cst_42 = arith.constant dense<0.000000e+00> : vector<8xf32>
    %61 = vector.multi_reduction <add>, %60, %cst_42 [1] : vector<8x32xf32> to vector<8xf32>
    %62 = vector.shape_cast %61 : vector<8xf32> to vector<8x1xf32>
    %cst_43 = arith.constant 3.125000e-02 : f32
    %63 = vector.broadcast %cst_43 : f32 to vector<8x1xf32>
    %64 = arith.mulf %62, %63 : vector<8x1xf32>
    %65 = arith.mulf %59, %59 : vector<8x1xf32>
    %66 = arith.subf %64, %65 : vector<8x1xf32>
    %67 = vector.broadcast %59 : vector<8x1xf32> to vector<8x32xf32>
    %68 = arith.subf %51, %67 : vector<8x32xf32>
    %cst_44 = arith.constant 9.99999974E-6 : f32
    %69 = vector.broadcast %cst_44 : f32 to vector<8x1xf32>
    %70 = arith.addf %66, %69 : vector<8x1xf32>
    %71 = math.rsqrt %70 : vector<8x1xf32>
    %72 = vector.broadcast %71 : vector<8x1xf32> to vector<8x32xf32>
    %73 = arith.mulf %68, %72 : vector<8x32xf32>
    %74 = vector.broadcast %53 : vector<1x32xf32> to vector<8x32xf32>
    %75 = arith.mulf %73, %74 : vector<8x32xf32>
    %76 = vector.broadcast %55 : vector<1x32xf32> to vector<8x32xf32>
    %77 = arith.addf %75, %76 : vector<8x32xf32>
    %c0_45 = arith.constant 0 : index
    %c0_46 = arith.constant 0 : index
    %c0_47 = arith.constant 0 : index
    %78 = vector.load %arg13[%c0_45, %c0_46, %c0_47] : memref<1x32x64xf32, #tpu.memory_space<vmem>>, vector<1x32x64xf32>
    %79 = vector.shape_cast %78 : vector<1x32x64xf32> to vector<32x64xf32>
    %cst_48 = arith.constant dense<0.000000e+00> : vector<8x64xf32>
    %80 = tpu.matmul %77, %79, %cst_48 {dimension_numbers = #tpu.dot_dimension_numbers<[1], [0], [0], [1], [0, 0, 1, 1], [], []>} : vector<8x32xf32>, vector<32x64xf32>, vector<8x64xf32> -> vector<8x64xf32>
    %c0_49 = arith.constant 0 : index
    %c0_50 = arith.constant 0 : index
    %c0_51 = arith.constant 0 : index
    %81 = vector.load %arg14[%c0_49, %c0_50, %c0_51] : memref<1x1x64xf32, #tpu.memory_space<vmem>>, vector<1x1x64xf32>
    %82 = vector.shape_cast %81 : vector<1x1x64xf32> to vector<1x64xf32>
    %83 = vector.broadcast %82 : vector<1x64xf32> to vector<8x64xf32>
    %84 = arith.addf %80, %83 : vector<8x64xf32>
    %cst_52 = arith.constant 0.000000e+00 : f32
    %85 = vector.broadcast %cst_52 : f32 to vector<8x64xf32>
    %86 = arith.maximumf %84, %85 : vector<8x64xf32>
    %c0_53 = arith.constant 0 : index
    %c0_54 = arith.constant 0 : index
    %c0_55 = arith.constant 0 : index
    %87 = vector.load %arg15[%c0_53, %c0_54, %c0_55] : memref<1x64x32xf32, #tpu.memory_space<vmem>>, vector<1x64x32xf32>
    %88 = vector.shape_cast %87 : vector<1x64x32xf32> to vector<64x32xf32>
    %cst_56 = arith.constant dense<0.000000e+00> : vector<8x32xf32>
    %89 = tpu.matmul %86, %88, %cst_56 {dimension_numbers = #tpu.dot_dimension_numbers<[1], [0], [0], [1], [0, 0, 1, 1], [], []>} : vector<8x64xf32>, vector<64x32xf32>, vector<8x32xf32> -> vector<8x32xf32>
    %c0_57 = arith.constant 0 : index
    %c0_58 = arith.constant 0 : index
    %c0_59 = arith.constant 0 : index
    %90 = vector.load %arg16[%c0_57, %c0_58, %c0_59] : memref<1x1x32xf32, #tpu.memory_space<vmem>>, vector<1x1x32xf32>
    %91 = vector.shape_cast %90 : vector<1x1x32xf32> to vector<1x32xf32>
    %92 = vector.broadcast %91 : vector<1x32xf32> to vector<8x32xf32>
    %93 = arith.addf %89, %92 : vector<8x32xf32>
    %94 = arith.addf %93, %77 : vector<8x32xf32>
    %c0_60 = arith.constant 0 : index
    %c0_61 = arith.constant 0 : index
    %c0_62 = arith.constant 0 : index
    %95 = vector.load %arg17[%c0_60, %c0_61, %c0_62] : memref<1x1x32xf32, #tpu.memory_space<vmem>>, vector<1x1x32xf32>
    %96 = vector.shape_cast %95 : vector<1x1x32xf32> to vector<1x32xf32>
    %c0_63 = arith.constant 0 : index
    %c0_64 = arith.constant 0 : index
    %c0_65 = arith.constant 0 : index
    %97 = vector.load %arg18[%c0_63, %c0_64, %c0_65] : memref<1x1x32xf32, #tpu.memory_space<vmem>>, vector<1x1x32xf32>
    %98 = vector.shape_cast %97 : vector<1x1x32xf32> to vector<1x32xf32>
    %cst_66 = arith.constant dense<0.000000e+00> : vector<8xf32>
    %99 = vector.multi_reduction <add>, %94, %cst_66 [1] : vector<8x32xf32> to vector<8xf32>
    %100 = vector.shape_cast %99 : vector<8xf32> to vector<8x1xf32>
    %cst_67 = arith.constant 3.125000e-02 : f32
    %101 = vector.broadcast %cst_67 : f32 to vector<8x1xf32>
    %102 = arith.mulf %100, %101 : vector<8x1xf32>
    %103 = arith.mulf %94, %94 : vector<8x32xf32>
    %cst_68 = arith.constant dense<0.000000e+00> : vector<8xf32>
    %104 = vector.multi_reduction <add>, %103, %cst_68 [1] : vector<8x32xf32> to vector<8xf32>
    %105 = vector.shape_cast %104 : vector<8xf32> to vector<8x1xf32>
    %cst_69 = arith.constant 3.125000e-02 : f32
    %106 = vector.broadcast %cst_69 : f32 to vector<8x1xf32>
    %107 = arith.mulf %105, %106 : vector<8x1xf32>
    %108 = arith.mulf %102, %102 : vector<8x1xf32>
    %109 = arith.subf %107, %108 : vector<8x1xf32>
    %110 = vector.broadcast %102 : vector<8x1xf32> to vector<8x32xf32>
    %111 = arith.subf %94, %110 : vector<8x32xf32>
    %cst_70 = arith.constant 9.99999974E-6 : f32
    %112 = vector.broadcast %cst_70 : f32 to vector<8x1xf32>
    %113 = arith.addf %109, %112 : vector<8x1xf32>
    %114 = math.rsqrt %113 : vector<8x1xf32>
    %115 = vector.broadcast %114 : vector<8x1xf32> to vector<8x32xf32>
    %116 = arith.mulf %111, %115 : vector<8x32xf32>
    %117 = vector.broadcast %96 : vector<1x32xf32> to vector<8x32xf32>
    %118 = arith.mulf %116, %117 : vector<8x32xf32>
    %119 = vector.broadcast %98 : vector<1x32xf32> to vector<8x32xf32>
    %120 = arith.addf %118, %119 : vector<8x32xf32>
    %c0_71 = arith.constant 0 : index
    %c0_72 = arith.constant 0 : index
    %121 = vector.load %arg20[%c0_71, %c0_72] : memref<8x32xf32, #tpu.memory_space<vmem>>, vector<8x32xf32>
    tpu.vector_store %arg20[%c0_71, %c0_72], %120 {strides = array<i32>} : memref<8x32xf32, #tpu.memory_space<vmem>>, vector<8x32xf32>,
    %c1_i32 = arith.constant 1 : i32
    %122 = arith.cmpi eq, %arg1, %c1_i32 : i32
    %123 = arith.extui %122 : i1 to i32
    %c0_i32_73 = arith.constant 0 : i32
    %124 = arith.cmpi ne, %123, %c0_i32_73 : i32
    scf.if %124 {
      %c0_74 = arith.constant 0 : index
      %c0_75 = arith.constant 0 : index
      %c0_76 = arith.constant 0 : index
      %125 = vector.load %arg19[%c0_74, %c0_75, %c0_76] : memref<1x8x32xf32, #tpu.memory_space<vmem>>, vector<1x8x32xf32>
      %126 = vector.shape_cast %125 : vector<1x8x32xf32> to vector<8x32xf32>
      %127 = vector.shape_cast %120 : vector<8x32xf32> to vector<1x8x32xf32>
      tpu.vector_store %arg19[%c0_74, %c0_75, %c0_76], %127 {strides = array<i32>} : memref<1x8x32xf32, #tpu.memory_space<vmem>>, vector<1x8x32xf32>,
    } else {
    }
    return
  }
  func.func @transform_0(%arg0: i32, %arg1: i32) -> (i32, i32, i32) {
    %c0_i32 = arith.constant 0 : i32
    %c0_i32_0 = arith.constant 0 : i32
    %c0_i32_1 = arith.constant 0 : i32
    return %arg0, %c0_i32, %c0_i32_0 : i32, i32, i32
  }
  func.func @transform_1(%arg0: i32, %arg1: i32) -> (i32, i32, i32) {
    %c0_i32 = arith.constant 0 : i32
    %c0_i32_0 = arith.constant 0 : i32
    %c0_i32_1 = arith.constant 0 : i32
    return %arg1, %c0_i32, %c0_i32_0 : i32, i32, i32
  }
  func.func @transform_2(%arg0: i32, %arg1: i32) -> (i32, i32, i32) {
    %c0_i32 = arith.constant 0 : i32
    %c0_i32_0 = arith.constant 0 : i32
    %c0_i32_1 = arith.constant 0 : i32
    return %arg1, %c0_i32, %c0_i32_0 : i32, i32, i32
  }
  func.func @transform_3(%arg0: i32, %arg1: i32) -> (i32, i32, i32) {
    %c0_i32 = arith.constant 0 : i32
    %c0_i32_0 = arith.constant 0 : i32
    %c0_i32_1 = arith.constant 0 : i32
    return %arg1, %c0_i32, %c0_i32_0 : i32, i32, i32
  }
  func.func @transform_4(%arg0: i32, %arg1: i32) -> (i32, i32, i32) {
    %c0_i32 = arith.constant 0 : i32
    %c0_i32_0 = arith.constant 0 : i32
    %c0_i32_1 = arith.constant 0 : i32
    return %arg1, %c0_i32, %c0_i32_0 : i32, i32, i32
  }
  func.func @transform_5(%arg0: i32, %arg1: i32) -> (i32, i32, i32) {
    %c0_i32 = arith.constant 0 : i32
    %c0_i32_0 = arith.constant 0 : i32
    %c0_i32_1 = arith.constant 0 : i32
    return %arg1, %c0_i32, %c0_i32_0 : i32, i32, i32
  }
  func.func @transform_6(%arg0: i32, %arg1: i32) -> (i32, i32, i32) {
    %c0_i32 = arith.constant 0 : i32
    %c0_i32_0 = arith.constant 0 : i32
    %c0_i32_1 = arith.constant 0 : i32
    return %arg1, %c0_i32, %c0_i32_0 : i32, i32, i32
  }
  func.func @transform_7(%arg0: i32, %arg1: i32) -> (i32, i32, i32) {
    %c0_i32 = arith.constant 0 : i32
    %c0_i32_0 = arith.constant 0 : i32
    %c0_i32_1 = arith.constant 0 : i32
    return %arg1, %c0_i32, %c0_i32_0 : i32, i32, i32
  }
  func.func @transform_8(%arg0: i32, %arg1: i32) -> (i32, i32, i32) {
    %c0_i32 = arith.constant 0 : i32
    %c0_i32_0 = arith.constant 0 : i32
    %c0_i32_1 = arith.constant 0 : i32
    return %arg1, %c0_i32, %c0_i32_0 : i32, i32, i32
  }
  func.func @transform_9(%arg0: i32, %arg1: i32) -> (i32, i32, i32) {
    %c0_i32 = arith.constant 0 : i32
    %c0_i32_0 = arith.constant 0 : i32
    %c0_i32_1 = arith.constant 0 : i32
    return %arg1, %c0_i32, %c0_i32_0 : i32, i32, i32
  }
  func.func @transform_10(%arg0: i32, %arg1: i32) -> (i32, i32, i32) {
    %c0_i32 = arith.constant 0 : i32
    %c0_i32_0 = arith.constant 0 : i32
    %c0_i32_1 = arith.constant 0 : i32
    return %arg1, %c0_i32, %c0_i32_0 : i32, i32, i32
  }
  func.func @transform_11(%arg0: i32, %arg1: i32) -> (i32, i32, i32) {
    %c0_i32 = arith.constant 0 : i32
    %c0_i32_0 = arith.constant 0 : i32
    %c0_i32_1 = arith.constant 0 : i32
    return %arg1, %c0_i32, %c0_i32_0 : i32, i32, i32
  }
  func.func @transform_12(%arg0: i32, %arg1: i32) -> (i32, i32, i32) {
    %c0_i32 = arith.constant 0 : i32
    %c0_i32_0 = arith.constant 0 : i32
    %c0_i32_1 = arith.constant 0 : i32
    return %arg1, %c0_i32, %c0_i32_0 : i32, i32, i32
  }
  func.func @transform_13(%arg0: i32, %arg1: i32) -> (i32, i32, i32) {
    %c0_i32 = arith.constant 0 : i32
    %c0_i32_0 = arith.constant 0 : i32
    %c0_i32_1 = arith.constant 0 : i32
    return %arg1, %c0_i32, %c0_i32_0 : i32, i32, i32
  }
  func.func @transform_14(%arg0: i32, %arg1: i32) -> (i32, i32, i32) {
    %c0_i32 = arith.constant 0 : i32
    %c0_i32_0 = arith.constant 0 : i32
    %c0_i32_1 = arith.constant 0 : i32
    return %arg1, %c0_i32, %c0_i32_0 : i32, i32, i32
  }
  func.func @transform_15(%arg0: i32, %arg1: i32) -> (i32, i32, i32) {
    %c0_i32 = arith.constant 0 : i32
    %c0_i32_0 = arith.constant 0 : i32
    %c0_i32_1 = arith.constant 0 : i32
    return %arg1, %c0_i32, %c0_i32_0 : i32, i32, i32
  }
  func.func @transform_16(%arg0: i32, %arg1: i32) -> (i32, i32, i32) {
    %c0_i32 = arith.constant 0 : i32
    %c0_i32_0 = arith.constant 0 : i32
    %c0_i32_1 = arith.constant 0 : i32
    return %arg1, %c0_i32, %c0_i32_0 : i32, i32, i32
  }
  func.func @transform_17(%arg0: i32, %arg1: i32) -> (i32, i32, i32) {
    %c0_i32 = arith.constant 0 : i32
    %c0_i32_0 = arith.constant 0 : i32
    %c0_i32_1 = arith.constant 0 : i32
    return %arg0, %c0_i32, %c0_i32_0 : i32, i32, i32
  }
}

</mosaic_0001>

<llo_original>
// kernel: tpu_custom_call.1
$region0: #{tpu_custom_call.1}
  #allocation0 [shape = 'u32[]', space=smem, size = 0x4, offset = 0x4, fixed_abs, tag = 'smem constant byte address 0x4 - core index']
  #allocation1 [shape = 'u32[72,128]{1,0:T(1,128)}', space=vmem, size = 0x9000, scoped, tag = 'internal scratch']
  #allocation2 [shape = 'f32[8,32]{1,0:T(8,128)}', space=vmem, size = 0x1000, scoped, tag = 'scratch operand']
  %s0 = inlined_call_operand.hbm [shape: f32[2,8,32], index: 0, kind: input, shape index: {}]
  %s1 = inlined_call_operand.vmem [shape: f32[2,32,32], index: 1, kind: input, shape index: {}]
  %s2 = inlined_call_operand.hbm [shape: f32[2,1,32], index: 2, kind: input, shape index: {}]
  %s3 = inlined_call_operand.vmem [shape: f32[2,32,32], index: 3, kind: input, shape index: {}]
  %s4 = inlined_call_operand.vmem [shape: f32[2,1,32], index: 4, kind: input, shape index: {}]
  %s5 = inlined_call_operand.vmem [shape: f32[2,32,32], index: 5, kind: input, shape index: {}]
  %s6 = inlined_call_operand.vmem [shape: f32[2,1,32], index: 6, kind: input, shape index: {}]
  %s7 = inlined_call_operand.hbm [shape: f32[2,32,32], index: 7, kind: input, shape index: {}]
  %s8 = inlined_call_operand.hbm [shape: f32[2,1,32], index: 8, kind: input, shape index: {}]
  %s9 = inlined_call_operand.vmem [shape: f32[2,1,32], index: 9, kind: input, shape index: {}]
  %s10 = inlined_call_operand.vmem [shape: f32[2,1,32], index: 10, kind: input, shape index: {}]
  %s11 = inlined_call_operand.hbm [shape: f32[2,32,64], index: 11, kind: input, shape index: {}]
  %s12 = inlined_call_operand.vmem [shape: f32[2,1,64], index: 12, kind: input, shape index: {}]
  %s13 = inlined_call_operand.vmem [shape: f32[2,64,32], index: 13, kind: input, shape index: {}]
  %s14 = inlined_call_operand.hbm [shape: f32[2,1,32], index: 14, kind: input, shape index: {}]
  %s15 = inlined_call_operand.vmem [shape: f32[2,1,32], index: 15, kind: input, shape index: {}]
  %s16 = inlined_call_operand.vmem [shape: f32[2,1,32], index: 16, kind: input, shape index: {}]
  %s17 = inlined_call_operand.hbm [shape: f32[2,8,32], index: 17, kind: output, shape index: {}]
  %s18 = sld [smem:[#allocation0]]
  $region133: #{tpu_custom_call.1} parent=0
    _
  %s20 = ssub.s32 1, %s18
  %s21 = scalar_select 0, %s20, %s18
  $region1: #{tpu_custom_call.1} parent=0
    #allocation3 [shape = 'u8[8192]{0}', space=vmem, size = 0x2000, scoped, tag = 'input window, operand 0']
    #allocation4 [shape = 's32[2]{0}', space=sflag, size = 0x8, scoped, tag = 'scoped memory for tpu_custom_call.1']
    #allocation5 [shape = 's32[2]{0}', space=sflag, size = 0x8, scoped, tag = 'scoped memory for tpu_custom_call.1']
    #allocation6 [shape = 'u8[1024]{0}', space=vmem, size = 0x400, scoped, tag = 'input window, operand 2']
    #allocation7 [shape = 's32[2]{0}', space=sflag, size = 0x8, scoped, tag = 'scoped memory for tpu_custom_call.1']
    #allocation8 [shape = 'u8[32768]{0}', space=vmem, size = 0x8000, scoped, tag = 'input window, operand 7']
    #allocation9 [shape = 'u8[1024]{0}', space=vmem, size = 0x400, scoped, tag = 'input window, operand 8']
    #allocation10 [shape = 's32[2]{0}', space=sflag, size = 0x8, scoped, tag = 'scoped memory for tpu_custom_call.1']
    #allocation11 [shape = 'u8[32768]{0}', space=vmem, size = 0x8000, scoped, tag = 'input window, operand 11']
    #allocation12 [shape = 'u8[1024]{0}', space=vmem, size = 0x400, scoped, tag = 'input window, operand 14']
    #allocation13 [shape = 's32[2]{0}', space=sflag, size = 0x8, scoped, tag = 'scoped memory for tpu_custom_call.1']
    #allocation14 [shape = 'u8[8192]{0}', space=vmem, size = 0x2000, scoped, tag = 'output window, operand 0']
    %22 = vsyncpa [#allocation4], 0
    %s23 = scalar_lea.sflag [#allocation4], 1
    %24 = vsyncpa %s23, 0
    %25 = vsyncpa [#allocation7], 0
    %s26 = scalar_lea.sflag [#allocation7], 1
    %27 = vsyncpa %s26, 0
    %28 = vsyncpa [#allocation10], 0
    %s29 = scalar_lea.sflag [#allocation10], 1
    %30 = vsyncpa %s29, 0
    %31 = vsyncpa [#allocation13], 0
    %s32 = scalar_lea.sflag [#allocation13], 1
    %33 = vsyncpa %s32, 0
    %34 = vsyncpa [#allocation5], 0
    %s35 = scalar_lea.sflag [#allocation5], 1
    %36 = vsyncpa %s35, 0
    loop: start=0, step=1, limit=6
    $region2: #{tpu_custom_call.1} parent=1 // loop_pre_header
      _
    $region3: #{tpu_custom_call.1} parent=1 // loop_header
      %s38 = sphi 0, %s42
      %p39 = scmp.ge.s32.totalorder %s38, 6
      %s45 = sphi 0, %s57
      %s46 = sphi 0, %s53
      %s47 = sphi 0, %s45
      %s48 = sphi 0, %s46
      %s49 = sphi 0, %s47
      %s50 = sphi 0, %s48
      %s60 = sphi 0, %s62
      %s63 = sphi 0, %s60
      %s64 = sphi 0, %s63
      %s80 = sphi 0, %s64
      %s86 = sphi 0, %s88
      %s89 = sphi 0, %s86
      %s90 = sphi 0, %s89
      %s106 = sphi 0, %s90
      %s112 = sphi 0, %s114
      %s115 = sphi 0, %s112
      %s116 = sphi 0, %s115
      %s132 = sphi 0, %s116
      %s138 = sphi 0, %s140
      %s141 = sphi 0, %s138
      %s142 = sphi 0, %s141
      %s158 = sphi 0, %s142
      %s164 = sphi 0, %s166
      %s167 = sphi 0, %s164
      %s168 = sphi 0, %s167
      %s184 = sphi 0, %s168
      %s190 = sphi 0, %s192
      %s193 = sphi 0, %s190
      %s194 = sphi 0, %s193
      %s210 = sphi 0, %s194
      %s216 = sphi 0, %s218
      %s219 = sphi 0, %s216
      %s220 = sphi 0, %s219
      %s236 = sphi 0, %s220
      %s242 = sphi 0, %s244
      %s245 = sphi 0, %s242
      %s246 = sphi 0, %s245
      %s262 = sphi 0, %s246
      %s268 = sphi 0, %s270
      %s271 = sphi 0, %s268
      %s272 = sphi 0, %s271
      %s288 = sphi 0, %s272
      %s294 = sphi 0, %s296
      %s297 = sphi 0, %s294
      %s298 = sphi 0, %s297
      %s314 = sphi 0, %s298
      %s320 = sphi 0, %s322
      %s323 = sphi 0, %s320
      %s324 = sphi 0, %s323
      %s340 = sphi 0, %s324
      %s346 = sphi 0, %s348
      %s349 = sphi 0, %s346
      %s350 = sphi 0, %s349
      %s366 = sphi 0, %s350
      %s372 = sphi 0, %s374
      %s375 = sphi 0, %s372
      %s376 = sphi 0, %s375
      %s392 = sphi 0, %s376
      %s398 = sphi 0, %s400
      %s401 = sphi 0, %s398
      %s402 = sphi 0, %s401
      %s418 = sphi 0, %s402
      %s424 = sphi 0, %s426
      %s427 = sphi 0, %s424
      %s428 = sphi 0, %s427
      %s444 = sphi 0, %s428
      %s450 = sphi 0, %s452
      %s453 = sphi 0, %s450
      %s454 = sphi 0, %s453
      %s470 = sphi 0, %s454
      %s476 = sphi 0, %s478
      %s479 = sphi 0, %s476
      %s480 = sphi 0, %s479
      %s496 = sphi 0, %s480
      %s502 = sphi 0, %s504
      %s505 = sphi 0, %s502
      %s506 = sphi 0, %s505
      %s522 = sphi 0, %s506
    $region4: #{tpu_custom_call.1} parent=1 // loop_header_branch
      %41 = sbr.rel (%p39) target = $region8
    $region5: #{tpu_custom_call.1} parent=1 // loop_body
      %s43 = ssub.s32 %s38, 1
      %s44 = ssub.s32 %s38, 2
      %s51 = sadd.s32 1, %s46
      %p52 = scmp.ge.s32.totalorder %s51, 2
      %s53 = scalar_select %p52, 0, %s51
      %s54 = sadd.s32 1, %s45
      %s55 = scalar_select %p52, %s54, %s45
      %p56 = scmp.ge.s32.totalorder %s55, 2
      %s57 = scalar_select %p56, 0, %s55
      %s58 = ssub.s32 %s45, %s57
      %p59 = scmp.eq.s32.totalorder %s58, 0
      %s61 = sadd.s32 %s60, 1
      %s62 = scalar_select %p59, %s60, %s61
      %p65 = pneg %p59
      %p66 = scmp.eq.s32.totalorder %s38, 3
      %p67 = por %p65, %p66
      %p68 = scmp.ne.s32.totalorder %s60, %s63
      %p69 = scmp.eq.s32.totalorder %s38, 0
      %p70 = por %p68, %p69
      %p71 = scmp.ne.s32.totalorder %s60, %s63
      %p72 = scmp.eq.s32.totalorder %s43, 3
      %p73 = por %p71, %p72
      %p74 = scmp.ne.s32.totalorder %s63, %s64
      %p75 = scmp.eq.s32.totalorder %s43, 0
      %p76 = por %p74, %p75
      %p77 = scmp.ne.s32.totalorder %s63, %s64
      %p78 = scmp.eq.s32.totalorder %s44, 3
      %p79 = por %p77, %p78
      %p81 = scmp.ne.s32.totalorder %s64, %s80
      %p82 = scmp.eq.s32.totalorder %s44, 0
      %p83 = por %p81, %p82
      %s84 = ssub.s32 %s46, %s53
      %p85 = scmp.eq.s32.totalorder %s84, 0
      %s87 = sadd.s32 %s86, 1
      %s88 = scalar_select %p85, %s86, %s87
      %p91 = pneg %p85
      %p92 = scmp.eq.s32.totalorder %s38, 3
      %p93 = por %p91, %p92
      %p94 = scmp.ne.s32.totalorder %s86, %s89
      %p95 = scmp.eq.s32.totalorder %s38, 0
      %p96 = por %p94, %p95
      %p97 = scmp.ne.s32.totalorder %s86, %s89
      %p98 = scmp.eq.s32.totalorder %s43, 3
      %p99 = por %p97, %p98
      %p100 = scmp.ne.s32.totalorder %s89, %s90
      %p101 = scmp.eq.s32.totalorder %s43, 0
      %p102 = por %p100, %p101
      %p103 = scmp.ne.s32.totalorder %s89, %s90
      %p104 = scmp.eq.s32.totalorder %s44, 3
      %p105 = por %p103, %p104
      %p107 = scmp.ne.s32.totalorder %s90, %s106
      %p108 = scmp.eq.s32.totalorder %s44, 0
      %p109 = por %p107, %p108
      %s110 = ssub.s32 %s46, %s53
      %p111 = scmp.eq.s32.totalorder %s110, 0
      %s113 = sadd.s32 %s112, 1
      %s114 = scalar_select %p111, %s112, %s113
      %p117 = pneg %p111
      %p118 = scmp.eq.s32.totalorder %s38, 3
      %p119 = por %p117, %p118
      %p120 = scmp.ne.s32.totalorder %s112, %s115
      %p121 = scmp.eq.s32.totalorder %s38, 0
      %p122 = por %p120, %p121
      %p123 = scmp.ne.s32.totalorder %s112, %s115
      %p124 = scmp.eq.s32.totalorder %s43, 3
      %p125 = por %p123, %p124
      %p126 = scmp.ne.s32.totalorder %s115, %s116
      %p127 = scmp.eq.s32.totalorder %s43, 0
      %p128 = por %p126, %p127
      %p129 = scmp.ne.s32.totalorder %s115, %s116
      %p130 = scmp.eq.s32.totalorder %s44, 3
      %p131 = por %p129, %p130
      %p133 = scmp.ne.s32.totalorder %s116, %s132
      %p134 = scmp.eq.s32.totalorder %s44, 0
      %p135 = por %p133, %p134
      %s136 = ssub.s32 %s46, %s53
      %p137 = scmp.eq.s32.totalorder %s136, 0
      %s139 = sadd.s32 %s138, 1
      %s140 = scalar_select %p137, %s138, %s139
      %p143 = pneg %p137
      %p144 = scmp.eq.s32.totalorder %s38, 3
      %p145 = por %p143, %p144
      %p146 = scmp.ne.s32.totalorder %s138, %s141
      %p147 = scmp.eq.s32.totalorder %s38, 0
      %p148 = por %p146, %p147
      %p149 = scmp.ne.s32.totalorder %s138, %s141
      %p150 = scmp.eq.s32.totalorder %s43, 3
      %p151 = por %p149, %p150
      %p152 = scmp.ne.s32.totalorder %s141, %s142
      %p153 = scmp.eq.s32.totalorder %s43, 0
      %p154 = por %p152, %p153
      %p155 = scmp.ne.s32.totalorder %s141, %s142
      %p156 = scmp.eq.s32.totalorder %s44, 3
      %p157 = por %p155, %p156
      %p159 = scmp.ne.s32.totalorder %s142, %s158
      %p160 = scmp.eq.s32.totalorder %s44, 0
      %p161 = por %p159, %p160
      %s162 = ssub.s32 %s46, %s53
      %p163 = scmp.eq.s32.totalorder %s162, 0
      %s165 = sadd.s32 %s164, 1
      %s166 = scalar_select %p163, %s164, %s165
      %p169 = pneg %p163
      %p170 = scmp.eq.s32.totalorder %s38, 3
      %p171 = por %p169, %p170
      %p172 = scmp.ne.s32.totalorder %s164, %s167
      %p173 = scmp.eq.s32.totalorder %s38, 0
      %p174 = por %p172, %p173
      %p175 = scmp.ne.s32.totalorder %s164, %s167
      %p176 = scmp.eq.s32.totalorder %s43, 3
      %p177 = por %p175, %p176
      %p178 = scmp.ne.s32.totalorder %s167, %s168
      %p179 = scmp.eq.s32.totalorder %s43, 0
      %p180 = por %p178, %p179
      %p181 = scmp.ne.s32.totalorder %s167, %s168
      %p182 = scmp.eq.s32.totalorder %s44, 3
      %p183 = por %p181, %p182
      %p185 = scmp.ne.s32.totalorder %s168, %s184
      %p186 = scmp.eq.s32.totalorder %s44, 0
      %p187 = por %p185, %p186
      %s188 = ssub.s32 %s46, %s53
      %p189 = scmp.eq.s32.totalorder %s188, 0
      %s191 = sadd.s32 %s190, 1
      %s192 = scalar_select %p189, %s190, %s191
      %p195 = pneg %p189
      %p196 = scmp.eq.s32.totalorder %s38, 3
      %p197 = por %p195, %p196
      %p198 = scmp.ne.s32.totalorder %s190, %s193
      %p199 = scmp.eq.s32.totalorder %s38, 0
      %p200 = por %p198, %p199
      %p201 = scmp.ne.s32.totalorder %s190, %s193
      %p202 = scmp.eq.s32.totalorder %s43, 3
      %p203 = por %p201, %p202
      %p204 = scmp.ne.s32.totalorder %s193, %s194
      %p205 = scmp.eq.s32.totalorder %s43, 0
      %p206 = por %p204, %p205
      %p207 = scmp.ne.s32.totalorder %s193, %s194
      %p208 = scmp.eq.s32.totalorder %s44, 3
      %p209 = por %p207, %p208
      %p211 = scmp.ne.s32.totalorder %s194, %s210
      %p212 = scmp.eq.s32.totalorder %s44, 0
      %p213 = por %p211, %p212
      %s214 = ssub.s32 %s46, %s53
      %p215 = scmp.eq.s32.totalorder %s214, 0
      %s217 = sadd.s32 %s216, 1
      %s218 = scalar_select %p215, %s216, %s217
      %p221 = pneg %p215
      %p222 = scmp.eq.s32.totalorder %s38, 3
      %p223 = por %p221, %p222
      %p224 = scmp.ne.s32.totalorder %s216, %s219
      %p225 = scmp.eq.s32.totalorder %s38, 0
      %p226 = por %p224, %p225
      %p227 = scmp.ne.s32.totalorder %s216, %s219
      %p228 = scmp.eq.s32.totalorder %s43, 3
      %p229 = por %p227, %p228
      %p230 = scmp.ne.s32.totalorder %s219, %s220
      %p231 = scmp.eq.s32.totalorder %s43, 0
      %p232 = por %p230, %p231
      %p233 = scmp.ne.s32.totalorder %s219, %s220
      %p234 = scmp.eq.s32.totalorder %s44, 3
      %p235 = por %p233, %p234
      %p237 = scmp.ne.s32.totalorder %s220, %s236
      %p238 = scmp.eq.s32.totalorder %s44, 0
      %p239 = por %p237, %p238
      %s240 = ssub.s32 %s46, %s53
      %p241 = scmp.eq.s32.totalorder %s240, 0
      %s243 = sadd.s32 %s242, 1
      %s244 = scalar_select %p241, %s242, %s243
      %p247 = pneg %p241
      %p248 = scmp.eq.s32.totalorder %s38, 3
      %p249 = por %p247, %p248
      %p250 = scmp.ne.s32.totalorder %s242, %s245
      %p251 = scmp.eq.s32.totalorder %s38, 0
      %p252 = por %p250, %p251
      %p253 = scmp.ne.s32.totalorder %s242, %s245
      %p254 = scmp.eq.s32.totalorder %s43, 3
      %p255 = por %p253, %p254
      %p256 = scmp.ne.s32.totalorder %s245, %s246
      %p257 = scmp.eq.s32.totalorder %s43, 0
      %p258 = por %p256, %p257
      %p259 = scmp.ne.s32.totalorder %s245, %s246
      %p260 = scmp.eq.s32.totalorder %s44, 3
      %p261 = por %p259, %p260
      %p263 = scmp.ne.s32.totalorder %s246, %s262
      %p264 = scmp.eq.s32.totalorder %s44, 0
      %p265 = por %p263, %p264
      %s266 = ssub.s32 %s46, %s53
      %p267 = scmp.eq.s32.totalorder %s266, 0
      %s269 = sadd.s32 %s268, 1
      %s270 = scalar_select %p267, %s268, %s269
      %p273 = pneg %p267
      %p274 = scmp.eq.s32.totalorder %s38, 3
      %p275 = por %p273, %p274
      %p276 = scmp.ne.s32.totalorder %s268, %s271
      %p277 = scmp.eq.s32.totalorder %s38, 0
      %p278 = por %p276, %p277
      %p279 = scmp.ne.s32.totalorder %s268, %s271
      %p280 = scmp.eq.s32.totalorder %s43, 3
      %p281 = por %p279, %p280
      %p282 = scmp.ne.s32.totalorder %s271, %s272
      %p283 = scmp.eq.s32.totalorder %s43, 0
      %p284 = por %p282, %p283
      %p285 = scmp.ne.s32.totalorder %s271, %s272
      %p286 = scmp.eq.s32.totalorder %s44, 3
      %p287 = por %p285, %p286
      %p289 = scmp.ne.s32.totalorder %s272, %s288
      %p290 = scmp.eq.s32.totalorder %s44, 0
      %p291 = por %p289, %p290
      %s292 = ssub.s32 %s46, %s53
      %p293 = scmp.eq.s32.totalorder %s292, 0
      %s295 = sadd.s32 %s294, 1
      %s296 = scalar_select %p293, %s294, %s295
      %p299 = pneg %p293
      %p300 = scmp.eq.s32.totalorder %s38, 3
      %p301 = por %p299, %p300
      %p302 = scmp.ne.s32.totalorder %s294, %s297
      %p303 = scmp.eq.s32.totalorder %s38, 0
      %p304 = por %p302, %p303
      %p305 = scmp.ne.s32.totalorder %s294, %s297
      %p306 = scmp.eq.s32.totalorder %s43, 3
      %p307 = por %p305, %p306
      %p308 = scmp.ne.s32.totalorder %s297, %s298
      %p309 = scmp.eq.s32.totalorder %s43, 0
      %p310 = por %p308, %p309
      %p311 = scmp.ne.s32.totalorder %s297, %s298
      %p312 = scmp.eq.s32.totalorder %s44, 3
      %p313 = por %p311, %p312
      %p315 = scmp.ne.s32.totalorder %s298, %s314
      %p316 = scmp.eq.s32.totalorder %s44, 0
      %p317 = por %p315, %p316
      %s318 = ssub.s32 %s46, %s53
      %p319 = scmp.eq.s32.totalorder %s318, 0
      %s321 = sadd.s32 %s320, 1
      %s322 = scalar_select %p319, %s320, %s321
      %p325 = pneg %p319
      %p326 = scmp.eq.s32.totalorder %s38, 3
      %p327 = por %p325, %p326
      %p328 = scmp.ne.s32.totalorder %s320, %s323
      %p329 = scmp.eq.s32.totalorder %s38, 0
      %p330 = por %p328, %p329
      %p331 = scmp.ne.s32.totalorder %s320, %s323
      %p332 = scmp.eq.s32.totalorder %s43, 3
      %p333 = por %p331, %p332
      %p334 = scmp.ne.s32.totalorder %s323, %s324
      %p335 = scmp.eq.s32.totalorder %s43, 0
      %p336 = por %p334, %p335
      %p337 = scmp.ne.s32.totalorder %s323, %s324
      %p338 = scmp.eq.s32.totalorder %s44, 3
      %p339 = por %p337, %p338
      %p341 = scmp.ne.s32.totalorder %s324, %s340
      %p342 = scmp.eq.s32.totalorder %s44, 0
      %p343 = por %p341, %p342
      %s344 = ssub.s32 %s46, %s53
      %p345 = scmp.eq.s32.totalorder %s344, 0
      %s347 = sadd.s32 %s346, 1
      %s348 = scalar_select %p345, %s346, %s347
      %p351 = pneg %p345
      %p352 = scmp.eq.s32.totalorder %s38, 3
      %p353 = por %p351, %p352
      %p354 = scmp.ne.s32.totalorder %s346, %s349
      %p355 = scmp.eq.s32.totalorder %s38, 0
      %p356 = por %p354, %p355
      %p357 = scmp.ne.s32.totalorder %s346, %s349
      %p358 = scmp.eq.s32.totalorder %s43, 3
      %p359 = por %p357, %p358
      %p360 = scmp.ne.s32.totalorder %s349, %s350
      %p361 = scmp.eq.s32.totalorder %s43, 0
      %p362 = por %p360, %p361
      %p363 = scmp.ne.s32.totalorder %s349, %s350
      %p364 = scmp.eq.s32.totalorder %s44, 3
      %p365 = por %p363, %p364
      %p367 = scmp.ne.s32.totalorder %s350, %s366
      %p368 = scmp.eq.s32.totalorder %s44, 0
      %p369 = por %p367, %p368
      %s370 = ssub.s32 %s46, %s53
      %p371 = scmp.eq.s32.totalorder %s370, 0
      %s373 = sadd.s32 %s372, 1
      %s374 = scalar_select %p371, %s372, %s373
      %p377 = pneg %p371
      %p378 = scmp.eq.s32.totalorder %s38, 3
      %p379 = por %p377, %p378
      %p380 = scmp.ne.s32.totalorder %s372, %s375
      %p381 = scmp.eq.s32.totalorder %s38, 0
      %p382 = por %p380, %p381
      %p383 = scmp.ne.s32.totalorder %s372, %s375
      %p384 = scmp.eq.s32.totalorder %s43, 3
      %p385 = por %p383, %p384
      %p386 = scmp.ne.s32.totalorder %s375, %s376
      %p387 = scmp.eq.s32.totalorder %s43, 0
      %p388 = por %p386, %p387
      %p389 = scmp.ne.s32.totalorder %s375, %s376
      %p390 = scmp.eq.s32.totalorder %s44, 3
      %p391 = por %p389, %p390
      %p393 = scmp.ne.s32.totalorder %s376, %s392
      %p394 = scmp.eq.s32.totalorder %s44, 0
      %p395 = por %p393, %p394
      %s396 = ssub.s32 %s46, %s53
      %p397 = scmp.eq.s32.totalorder %s396, 0
      %s399 = sadd.s32 %s398, 1
      %s400 = scalar_select %p397, %s398, %s399
      %p403 = pneg %p397
      %p404 = scmp.eq.s32.totalorder %s38, 3
      %p405 = por %p403, %p404
      %p406 = scmp.ne.s32.totalorder %s398, %s401
      %p407 = scmp.eq.s32.totalorder %s38, 0
      %p408 = por %p406, %p407
      %p409 = scmp.ne.s32.totalorder %s398, %s401
      %p410 = scmp.eq.s32.totalorder %s43, 3
      %p411 = por %p409, %p410
      %p412 = scmp.ne.s32.totalorder %s401, %s402
      %p413 = scmp.eq.s32.totalorder %s43, 0
      %p414 = por %p412, %p413
      %p415 = scmp.ne.s32.totalorder %s401, %s402
      %p416 = scmp.eq.s32.totalorder %s44, 3
      %p417 = por %p415, %p416
      %p419 = scmp.ne.s32.totalorder %s402, %s418
      %p420 = scmp.eq.s32.totalorder %s44, 0
      %p421 = por %p419, %p420
      %s422 = ssub.s32 %s46, %s53
      %p423 = scmp.eq.s32.totalorder %s422, 0
      %s425 = sadd.s32 %s424, 1
      %s426 = scalar_select %p423, %s424, %s425
      %p429 = pneg %p423
      %p430 = scmp.eq.s32.totalorder %s38, 3
      %p431 = por %p429, %p430
      %p432 = scmp.ne.s32.totalorder %s424, %s427
      %p433 = scmp.eq.s32.totalorder %s38, 0
      %p434 = por %p432, %p433
      %p435 = scmp.ne.s32.totalorder %s424, %s427
      %p436 = scmp.eq.s32.totalorder %s43, 3
      %p437 = por %p435, %p436
      %p438 = scmp.ne.s32.totalorder %s427, %s428
      %p439 = scmp.eq.s32.totalorder %s43, 0
      %p440 = por %p438, %p439
      %p441 = scmp.ne.s32.totalorder %s427, %s428
      %p442 = scmp.eq.s32.totalorder %s44, 3
      %p443 = por %p441, %p442
      %p445 = scmp.ne.s32.totalorder %s428, %s444
      %p446 = scmp.eq.s32.totalorder %s44, 0
      %p447 = por %p445, %p446
      %s448 = ssub.s32 %s46, %s53
      %p449 = scmp.eq.s32.totalorder %s448, 0
      %s451 = sadd.s32 %s450, 1
      %s452 = scalar_select %p449, %s450, %s451
      %p455 = pneg %p449
      %p456 = scmp.eq.s32.totalorder %s38, 3
      %p457 = por %p455, %p456
      %p458 = scmp.ne.s32.totalorder %s450, %s453
      %p459 = scmp.eq.s32.totalorder %s38, 0
      %p460 = por %p458, %p459
      %p461 = scmp.ne.s32.totalorder %s450, %s453
      %p462 = scmp.eq.s32.totalorder %s43, 3
      %p463 = por %p461, %p462
      %p464 = scmp.ne.s32.totalorder %s453, %s454
      %p465 = scmp.eq.s32.totalorder %s43, 0
      %p466 = por %p464, %p465
      %p467 = scmp.ne.s32.totalorder %s453, %s454
      %p468 = scmp.eq.s32.totalorder %s44, 3
      %p469 = por %p467, %p468
      %p471 = scmp.ne.s32.totalorder %s454, %s470
      %p472 = scmp.eq.s32.totalorder %s44, 0
      %p473 = por %p471, %p472
      %s474 = ssub.s32 %s46, %s53
      %p475 = scmp.eq.s32.totalorder %s474, 0
      %s477 = sadd.s32 %s476, 1
      %s478 = scalar_select %p475, %s476, %s477
      %p481 = pneg %p475
      %p482 = scmp.eq.s32.totalorder %s38, 3
      %p483 = por %p481, %p482
      %p484 = scmp.ne.s32.totalorder %s476, %s479
      %p485 = scmp.eq.s32.totalorder %s38, 0
      %p486 = por %p484, %p485
      %p487 = scmp.ne.s32.totalorder %s476, %s479
      %p488 = scmp.eq.s32.totalorder %s43, 3
      %p489 = por %p487, %p488
      %p490 = scmp.ne.s32.totalorder %s479, %s480
      %p491 = scmp.eq.s32.totalorder %s43, 0
      %p492 = por %p490, %p491
      %p493 = scmp.ne.s32.totalorder %s479, %s480
      %p494 = scmp.eq.s32.totalorder %s44, 3
      %p495 = por %p493, %p494
      %p497 = scmp.ne.s32.totalorder %s480, %s496
      %p498 = scmp.eq.s32.totalorder %s44, 0
      %p499 = por %p497, %p498
      %s500 = ssub.s32 %s45, %s57
      %p501 = scmp.eq.s32.totalorder %s500, 0
      %s503 = sadd.s32 %s502, 1
      %s504 = scalar_select %p501, %s502, %s503
      %p507 = pneg %p501
      %p508 = scmp.eq.s32.totalorder %s38, 3
      %p509 = por %p507, %p508
      %p510 = scmp.ne.s32.totalorder %s502, %s505
      %p511 = scmp.eq.s32.totalorder %s38, 0
      %p512 = por %p510, %p511
      %p513 = scmp.ne.s32.totalorder %s502, %s505
      %p514 = scmp.eq.s32.totalorder %s43, 3
      %p515 = por %p513, %p514
      %p516 = scmp.ne.s32.totalorder %s505, %s506
      %p517 = scmp.eq.s32.totalorder %s43, 0
      %p518 = por %p516, %p517
      %p519 = scmp.ne.s32.totalorder %s505, %s506
      %p520 = scmp.eq.s32.totalorder %s44, 3
      %p521 = por %p519, %p520
      %p523 = scmp.ne.s32.totalorder %s506, %s522
      %p524 = scmp.eq.s32.totalorder %s44, 0
      %p525 = por %p523, %p524
      %p526 = scmp.le.s32.totalorder 1, %s38
      %p527 = scmp.lt.s32.totalorder %s38, 5
      %p528 = pnand %p526, %p527
      %p529 = pneg %p528
      // Predicated region
      $region9: #{tpu_custom_call.1} parent=5 // pred_check
        _
      $region10: #{tpu_custom_call.1} parent=5 // pred_check_branch
        %531 = sbr.rel (%p528) target = $region12
      $region11: #{tpu_custom_call.1} parent=5 // pred_region
        %s532 = ssub.s32 %s38, 1
      $region12: #{tpu_custom_call.1} parent=5 // pred_fallthru
        _
      %p533 = scmp.lt.s32.totalorder %s38, 4
      // Predicated region
      $region13: #{tpu_custom_call.1} parent=5 // pred_check
        %p534 = pneg %p533
      $region14: #{tpu_custom_call.1} parent=5 // pred_check_branch
        %536 = sbr.rel (%p534) target = $region16
      $region15: #{tpu_custom_call.1} parent=5 // pred_region
        // Predicated region
        $region17: #{tpu_custom_call.1} parent=15 // pred_check
          %p537 = pneg %p70
        $region18: #{tpu_custom_call.1} parent=15 // pred_check_branch
          %539 = sbr.rel (%p537) target = $region20
        $region19: #{tpu_custom_call.1} parent=15 // pred_region
          %s540 = sand.u32 %s60, 1
          %s541 = scalar_lea.sflag [#allocation4], %s540
          %s542 = sand.u32 %s60, 1
          %s543 = smul.addr %s542, 8
          %s544 = scalar_lea.vmem [#allocation3], %s543
          %546 = vsyncadd %s541, 0
          %s547 = smul.addr %s45, 8
          %s548 = scalar_lea.hbm %s0, %s547
          %s550 = sshll.u32 %s548, 4
          %s551 = int_to_ptr.hbm [resolvable:$true] %s550
          %s552 = sshll.u32 %s544, 4
          %s553 = int_to_ptr.vmem [resolvable:$true] %s552
          %555 = dma.hbm_to_vmem [thread:$0]  %s551, 128, %s553, %s541
        $region20: #{tpu_custom_call.1} parent=15 // pred_fallthru
          _
        // Predicated region
        $region21: #{tpu_custom_call.1} parent=15 // pred_check
          %p556 = pneg %p96
        $region22: #{tpu_custom_call.1} parent=15 // pred_check_branch
          %558 = sbr.rel (%p556) target = $region24
        $region23: #{tpu_custom_call.1} parent=15 // pred_region
          %p559 = scmp.lt.s32.totalorder %s46, 1
          %s560 = scalar_select %p559, %s46, 1
          %s561 = smul.addr %s560, 4
          %s562 = smul.addr %s561, 8
          %s563 = scalar_lea.vmem %s1, %s562
        $region24: #{tpu_custom_call.1} parent=15 // pred_fallthru
          _
        // Predicated region
        $region25: #{tpu_custom_call.1} parent=15 // pred_check
          %p564 = pneg %p122
        $region26: #{tpu_custom_call.1} parent=15 // pred_check_branch
          %566 = sbr.rel (%p564) target = $region28
        $region27: #{tpu_custom_call.1} parent=15 // pred_region
          %s567 = sand.u32 %s38, 1
          %s568 = scalar_lea.sflag [#allocation7], %s567
          %s569 = sand.u32 %s112, 1
          %s570 = scalar_lea.vmem [#allocation6], %s569
          %572 = vsyncadd %s568, 0
          %s573 = scalar_lea.hbm %s2, %s46
          %s575 = sshll.u32 %s573, 4
          %s576 = int_to_ptr.hbm [resolvable:$true] %s575
          %s577 = sshll.u32 %s570, 4
          %s578 = int_to_ptr.vmem [resolvable:$true] %s577
          %580 = dma.hbm_to_vmem [thread:$0]  %s576, 16, %s578, %s568
        $region28: #{tpu_custom_call.1} parent=15 // pred_fallthru
          _
        // Predicated region
        $region29: #{tpu_custom_call.1} parent=15 // pred_check
          %p581 = pneg %p148
        $region30: #{tpu_custom_call.1} parent=15 // pred_check_branch
          %583 = sbr.rel (%p581) target = $region32
        $region31: #{tpu_custom_call.1} parent=15 // pred_region
          %p584 = scmp.lt.s32.totalorder %s46, 1
          %s585 = scalar_select %p584, %s46, 1
          %s586 = smul.addr %s585, 4
          %s587 = smul.addr %s586, 8
          %s588 = scalar_lea.vmem %s3, %s587
        $region32: #{tpu_custom_call.1} parent=15 // pred_fallthru
          _
        // Predicated region
        $region33: #{tpu_custom_call.1} parent=15 // pred_check
          %p589 = pneg %p174
        $region34: #{tpu_custom_call.1} parent=15 // pred_check_branch
          %591 = sbr.rel (%p589) target = $region36
        $region35: #{tpu_custom_call.1} parent=15 // pred_region
          %p592 = scmp.lt.s32.totalorder %s46, 1
          %s593 = scalar_select %p592, %s46, 1
          %s594 = scalar_lea.vmem %s4, %s593
        $region36: #{tpu_custom_call.1} parent=15 // pred_fallthru
          _
        // Predicated region
        $region37: #{tpu_custom_call.1} parent=15 // pred_check
          %p595 = pneg %p200
        $region38: #{tpu_custom_call.1} parent=15 // pred_check_branch
          %597 = sbr.rel (%p595) target = $region40
        $region39: #{tpu_custom_call.1} parent=15 // pred_region
          %p598 = scmp.lt.s32.totalorder %s46, 1
          %s599 = scalar_select %p598, %s46, 1
          %s600 = smul.addr %s599, 4
          %s601 = smul.addr %s600, 8
          %s602 = scalar_lea.vmem %s5, %s601
        $region40: #{tpu_custom_call.1} parent=15 // pred_fallthru
          _
        // Predicated region
        $region41: #{tpu_custom_call.1} parent=15 // pred_check
          %p603 = pneg %p226
        $region42: #{tpu_custom_call.1} parent=15 // pred_check_branch
          %605 = sbr.rel (%p603) target = $region44
        $region43: #{tpu_custom_call.1} parent=15 // pred_region
          %p606 = scmp.lt.s32.totalorder %s46, 1
          %s607 = scalar_select %p606, %s46, 1
          %s608 = scalar_lea.vmem %s6, %s607
        $region44: #{tpu_custom_call.1} parent=15 // pred_fallthru
          _
        // Predicated region
        $region45: #{tpu_custom_call.1} parent=15 // pred_check
          %p609 = pneg %p252
        $region46: #{tpu_custom_call.1} parent=15 // pred_check_branch
          %611 = sbr.rel (%p609) target = $region48
        $region47: #{tpu_custom_call.1} parent=15 // pred_region
          %s612 = sand.u32 %s38, 1
          %s613 = scalar_lea.sflag [#allocation7], %s612
          %s614 = sand.u32 %s242, 1
          %s615 = smul.addr %s614, 32
          %s616 = scalar_lea.vmem [#allocation8], %s615
          %618 = vsyncadd %s613, 0
          %s619 = smul.addr %s46, 4
          %s620 = smul.addr %s619, 8
          %s621 = scalar_lea.hbm %s7, %s620
          %s622 = sshll.u32 %s621, 4
          %s623 = int_to_ptr.hbm [resolvable:$true] %s622
          %s624 = sshll.u32 %s616, 4
          %s625 = int_to_ptr.vmem [resolvable:$true] %s624
          %630 = dma.hbm_to_vmem [thread:$0]  %s623, 512, %s625, %s613, 128, 128, 8
        $region48: #{tpu_custom_call.1} parent=15 // pred_fallthru
          _
        // Predicated region
        $region49: #{tpu_custom_call.1} parent=15 // pred_check
          %p631 = pneg %p278
        $region50: #{tpu_custom_call.1} parent=15 // pred_check_branch
          %633 = sbr.rel (%p631) target = $region52
        $region51: #{tpu_custom_call.1} parent=15 // pred_region
          %s634 = sand.u32 %s38, 1
          %s635 = scalar_lea.sflag [#allocation10], %s634
          %s636 = sand.u32 %s268, 1
          %s637 = scalar_lea.vmem [#allocation9], %s636
          %639 = vsyncadd %s635, 0
          %s640 = scalar_lea.hbm %s8, %s46
          %s642 = sshll.u32 %s640, 4
          %s643 = int_to_ptr.hbm [resolvable:$true] %s642
          %s644 = sshll.u32 %s637, 4
          %s645 = int_to_ptr.vmem [resolvable:$true] %s644
          %647 = dma.hbm_to_vmem [thread:$0]  %s643, 16, %s645, %s635
        $region52: #{tpu_custom_call.1} parent=15 // pred_fallthru
          _
        // Predicated region
        $region53: #{tpu_custom_call.1} parent=15 // pred_check
          %p648 = pneg %p304
        $region54: #{tpu_custom_call.1} parent=15 // pred_check_branch
          %650 = sbr.rel (%p648) target = $region56
        $region55: #{tpu_custom_call.1} parent=15 // pred_region
          %p651 = scmp.lt.s32.totalorder %s46, 1
          %s652 = scalar_select %p651, %s46, 1
          %s653 = scalar_lea.vmem %s9, %s652
        $region56: #{tpu_custom_call.1} parent=15 // pred_fallthru
          _
        // Predicated region
        $region57: #{tpu_custom_call.1} parent=15 // pred_check
          %p654 = pneg %p330
        $region58: #{tpu_custom_call.1} parent=15 // pred_check_branch
          %656 = sbr.rel (%p654) target = $region60
        $region59: #{tpu_custom_call.1} parent=15 // pred_region
          %p657 = scmp.lt.s32.totalorder %s46, 1
          %s658 = scalar_select %p657, %s46, 1
          %s659 = scalar_lea.vmem %s10, %s658
        $region60: #{tpu_custom_call.1} parent=15 // pred_fallthru
          _
        // Predicated region
        $region61: #{tpu_custom_call.1} parent=15 // pred_check
          %p660 = pneg %p356
        $region62: #{tpu_custom_call.1} parent=15 // pred_check_branch
          %662 = sbr.rel (%p660) target = $region64
        $region63: #{tpu_custom_call.1} parent=15 // pred_region
          %s663 = sand.u32 %s38, 1
          %s664 = scalar_lea.sflag [#allocation10], %s663
          %s665 = sand.u32 %s346, 1
          %s666 = smul.addr %s665, 32
          %s667 = scalar_lea.vmem [#allocation11], %s666
          %669 = vsyncadd %s664, 0
          %s670 = smul.addr %s46, 4
          %s671 = smul.addr %s670, 8
          %s672 = scalar_lea.hbm %s11, %s671
          %s673 = sshll.u32 %s672, 4
          %s674 = int_to_ptr.hbm [resolvable:$true] %s673
          %s675 = sshll.u32 %s667, 4
          %s676 = int_to_ptr.vmem [resolvable:$true] %s675
          %681 = dma.hbm_to_vmem [thread:$0]  %s674, 512, %s676, %s664, 128, 128, 8
        $region64: #{tpu_custom_call.1} parent=15 // pred_fallthru
          _
        // Predicated region
        $region65: #{tpu_custom_call.1} parent=15 // pred_check
          %p682 = pneg %p382
        $region66: #{tpu_custom_call.1} parent=15 // pred_check_branch
          %684 = sbr.rel (%p682) target = $region68
        $region67: #{tpu_custom_call.1} parent=15 // pred_region
          %p685 = scmp.lt.s32.totalorder %s46, 1
          %s686 = scalar_select %p685, %s46, 1
          %s687 = scalar_lea.vmem %s12, %s686
        $region68: #{tpu_custom_call.1} parent=15 // pred_fallthru
          _
        // Predicated region
        $region69: #{tpu_custom_call.1} parent=15 // pred_check
          %p688 = pneg %p408
        $region70: #{tpu_custom_call.1} parent=15 // pred_check_branch
          %690 = sbr.rel (%p688) target = $region72
        $region71: #{tpu_custom_call.1} parent=15 // pred_region
          %p691 = scmp.lt.s32.totalorder %s46, 1
          %s692 = scalar_select %p691, %s46, 1
          %s693 = smul.addr %s692, 8
          %s694 = smul.addr %s693, 8
          %s695 = scalar_lea.vmem %s13, %s694
        $region72: #{tpu_custom_call.1} parent=15 // pred_fallthru
          _
        // Predicated region
        $region73: #{tpu_custom_call.1} parent=15 // pred_check
          %p696 = pneg %p434
        $region74: #{tpu_custom_call.1} parent=15 // pred_check_branch
          %698 = sbr.rel (%p696) target = $region76
        $region75: #{tpu_custom_call.1} parent=15 // pred_region
          %s699 = sand.u32 %s424, 1
          %s700 = scalar_lea.sflag [#allocation13], %s699
          %s701 = sand.u32 %s424, 1
          %s702 = scalar_lea.vmem [#allocation12], %s701
          %704 = vsyncadd %s700, 0
          %s705 = scalar_lea.hbm %s14, %s46
          %s707 = sshll.u32 %s705, 4
          %s708 = int_to_ptr.hbm [resolvable:$true] %s707
          %s709 = sshll.u32 %s702, 4
          %s710 = int_to_ptr.vmem [resolvable:$true] %s709
          %712 = dma.hbm_to_vmem [thread:$0]  %s708, 16, %s710, %s700
        $region76: #{tpu_custom_call.1} parent=15 // pred_fallthru
          _
        // Predicated region
        $region77: #{tpu_custom_call.1} parent=15 // pred_check
          %p713 = pneg %p460
        $region78: #{tpu_custom_call.1} parent=15 // pred_check_branch
          %715 = sbr.rel (%p713) target = $region80
        $region79: #{tpu_custom_call.1} parent=15 // pred_region
          %p716 = scmp.lt.s32.totalorder %s46, 1
          %s717 = scalar_select %p716, %s46, 1
          %s718 = scalar_lea.vmem %s15, %s717
        $region80: #{tpu_custom_call.1} parent=15 // pred_fallthru
          _
        // Predicated region
        $region81: #{tpu_custom_call.1} parent=15 // pred_check
          %p719 = pneg %p486
        $region82: #{tpu_custom_call.1} parent=15 // pred_check_branch
          %721 = sbr.rel (%p719) target = $region84
        $region83: #{tpu_custom_call.1} parent=15 // pred_region
          %p722 = scmp.lt.s32.totalorder %s46, 1
          %s723 = scalar_select %p722, %s46, 1
          %s724 = scalar_lea.vmem %s16, %s723
        $region84: #{tpu_custom_call.1} parent=15 // pred_fallthru
          _
      $region16: #{tpu_custom_call.1} parent=5 // pred_fallthru
        _
      %p725 = scmp.le.s32.totalorder 1, %s38
      %p726 = scmp.lt.s32.totalorder %s38, 5
      %p727 = pnand %p725, %p726
      %p728 = pneg %p727
      // Predicated region
      $region85: #{tpu_custom_call.1} parent=5 // pred_check
        _
      $region86: #{tpu_custom_call.1} parent=5 // pred_check_branch
        %730 = sbr.rel (%p727) target = $region88
      $region87: #{tpu_custom_call.1} parent=5 // pred_region
        %s731 = ssub.s32 %s38, 1
        %s732 = sand.u32 %s63, 1
        %s733 = scalar_lea.sflag [#allocation4], %s732
        %s734 = sand.u32 %s63, 1
        %s735 = smul.addr %s734, 8
        %s736 = scalar_lea.vmem [#allocation3], %s735
        // Predicated region
        $region89: #{tpu_custom_call.1} parent=87 // pred_check
          %p737 = pneg %p76
        $region90: #{tpu_custom_call.1} parent=87 // pred_check_branch
          %739 = sbr.rel (%p737) target = $region92
        $region91: #{tpu_custom_call.1} parent=87 // pred_region
          %741 = dma.done %s733, 128
        $region92: #{tpu_custom_call.1} parent=87 // pred_fallthru
          _
        %s742 = sand.u32 %s43, 1
        %s743 = scalar_lea.sflag [#allocation7], %s742
        %s744 = sand.u32 %s115, 1
        %s745 = scalar_lea.vmem [#allocation6], %s744
        // Predicated region
        $region93: #{tpu_custom_call.1} parent=87 // pred_check
          %p746 = pneg %p128
        $region94: #{tpu_custom_call.1} parent=87 // pred_check_branch
          %748 = sbr.rel (%p746) target = $region96
        $region95: #{tpu_custom_call.1} parent=87 // pred_region
          %750 = dma.done %s743, 16
        $region96: #{tpu_custom_call.1} parent=87 // pred_fallthru
          _
        %s751 = sand.u32 %s43, 1
        %s752 = scalar_lea.sflag [#allocation7], %s751
        %s753 = sand.u32 %s245, 1
        %s754 = smul.addr %s753, 32
        %s755 = scalar_lea.vmem [#allocation8], %s754
        // Predicated region
        $region97: #{tpu_custom_call.1} parent=87 // pred_check
          %p756 = pneg %p258
        $region98: #{tpu_custom_call.1} parent=87 // pred_check_branch
          %758 = sbr.rel (%p756) target = $region100
        $region99: #{tpu_custom_call.1} parent=87 // pred_region
          %760 = dma.done %s752, 512
        $region100: #{tpu_custom_call.1} parent=87 // pred_fallthru
          _
        %s761 = sand.u32 %s43, 1
        %s762 = scalar_lea.sflag [#allocation10], %s761
        %s763 = sand.u32 %s271, 1
        %s764 = scalar_lea.vmem [#allocation9], %s763
        // Predicated region
        $region101: #{tpu_custom_call.1} parent=87 // pred_check
          %p765 = pneg %p284
        $region102: #{tpu_custom_call.1} parent=87 // pred_check_branch
          %767 = sbr.rel (%p765) target = $region104
        $region103: #{tpu_custom_call.1} parent=87 // pred_region
          %769 = dma.done %s762, 16
        $region104: #{tpu_custom_call.1} parent=87 // pred_fallthru
          _
        %s770 = sand.u32 %s43, 1
        %s771 = scalar_lea.sflag [#allocation10], %s770
        %s772 = sand.u32 %s349, 1
        %s773 = smul.addr %s772, 32
        %s774 = scalar_lea.vmem [#allocation11], %s773
        // Predicated region
        $region105: #{tpu_custom_call.1} parent=87 // pred_check
          %p775 = pneg %p362
        $region106: #{tpu_custom_call.1} parent=87 // pred_check_branch
          %777 = sbr.rel (%p775) target = $region108
        $region107: #{tpu_custom_call.1} parent=87 // pred_region
          %779 = dma.done %s771, 512
        $region108: #{tpu_custom_call.1} parent=87 // pred_fallthru
          _
        %s780 = sand.u32 %s427, 1
        %s781 = scalar_lea.sflag [#allocation13], %s780
        %s782 = sand.u32 %s427, 1
        %s783 = scalar_lea.vmem [#allocation12], %s782
        // Predicated region
        $region109: #{tpu_custom_call.1} parent=87 // pred_check
          %p784 = pneg %p440
        $region110: #{tpu_custom_call.1} parent=87 // pred_check_branch
          %786 = sbr.rel (%p784) target = $region112
        $region111: #{tpu_custom_call.1} parent=87 // pred_region
          %788 = dma.done %s781, 16
        $region112: #{tpu_custom_call.1} parent=87 // pred_fallthru
          _
        %s789 = sand.u32 %s63, 1
        %s790 = scalar_lea.sflag [#allocation4], %s789
        %s791 = sand.u32 %s63, 1
        %s792 = smul.addr %s791, 8
        %s793 = scalar_lea.vmem [#allocation3], %s792
        %p794 = pneg %p76
        %p795 = pneg %p73
        %p796 = scmp.lt.s32.totalorder %s48, 1
        %s797 = scalar_select %p796, %s48, 1
        %s798 = smul.addr %s797, 4
        %s799 = smul.addr %s798, 8
        %s800 = scalar_lea.vmem %s1, %s799
        %p801 = pneg %p102
        %p802 = pneg %p99
        %s803 = sand.u32 %s43, 1
        %s804 = scalar_lea.sflag [#allocation7], %s803
        %s805 = sand.u32 %s115, 1
        %s806 = scalar_lea.vmem [#allocation6], %s805
        %p807 = pneg %p128
        %p808 = pneg %p125
        %p809 = scmp.lt.s32.totalorder %s48, 1
        %s810 = scalar_select %p809, %s48, 1
        %s811 = smul.addr %s810, 4
        %s812 = smul.addr %s811, 8
        %s813 = scalar_lea.vmem %s3, %s812
        %p814 = pneg %p154
        %p815 = pneg %p151
        %p816 = scmp.lt.s32.totalorder %s48, 1
        %s817 = scalar_select %p816, %s48, 1
        %s818 = scalar_lea.vmem %s4, %s817
        %p819 = pneg %p180
        %p820 = pneg %p177
        %p821 = scmp.lt.s32.totalorder %s48, 1
        %s822 = scalar_select %p821, %s48, 1
        %s823 = smul.addr %s822, 4
        %s824 = smul.addr %s823, 8
        %s825 = scalar_lea.vmem %s5, %s824
        %p826 = pneg %p206
        %p827 = pneg %p203
        %p828 = scmp.lt.s32.totalorder %s48, 1
        %s829 = scalar_select %p828, %s48, 1
        %s830 = scalar_lea.vmem %s6, %s829
        %p831 = pneg %p232
        %p832 = pneg %p229
        %s833 = sand.u32 %s43, 1
        %s834 = scalar_lea.sflag [#allocation7], %s833
        %s835 = sand.u32 %s245, 1
        %s836 = smul.addr %s835, 32
        %s837 = scalar_lea.vmem [#allocation8], %s836
        %p838 = pneg %p258
        %p839 = pneg %p255
        %s840 = sand.u32 %s43, 1
        %s841 = scalar_lea.sflag [#allocation10], %s840
        %s842 = sand.u32 %s271, 1
        %s843 = scalar_lea.vmem [#allocation9], %s842
        %p844 = pneg %p284
        %p845 = pneg %p281
        %p846 = scmp.lt.s32.totalorder %s48, 1
        %s847 = scalar_select %p846, %s48, 1
        %s848 = scalar_lea.vmem %s9, %s847
        %p849 = pneg %p310
        %p850 = pneg %p307
        %p851 = scmp.lt.s32.totalorder %s48, 1
        %s852 = scalar_select %p851, %s48, 1
        %s853 = scalar_lea.vmem %s10, %s852
        %p854 = pneg %p336
        %p855 = pneg %p333
        %s856 = sand.u32 %s43, 1
        %s857 = scalar_lea.sflag [#allocation10], %s856
        %s858 = sand.u32 %s349, 1
        %s859 = smul.addr %s858, 32
        %s860 = scalar_lea.vmem [#allocation11], %s859
        %p861 = pneg %p362
        %p862 = pneg %p359
        %p863 = scmp.lt.s32.totalorder %s48, 1
        %s864 = scalar_select %p863, %s48, 1
        %s865 = scalar_lea.vmem %s12, %s864
        %p866 = pneg %p388
        %p867 = pneg %p385
        %p868 = scmp.lt.s32.totalorder %s48, 1
        %s869 = scalar_select %p868, %s48, 1
        %s870 = smul.addr %s869, 8
        %s871 = smul.addr %s870, 8
        %s872 = scalar_lea.vmem %s13, %s871
        %p873 = pneg %p414
        %p874 = pneg %p411
        %s875 = sand.u32 %s427, 1
        %s876 = scalar_lea.sflag [#allocation13], %s875
        %s877 = sand.u32 %s427, 1
        %s878 = scalar_lea.vmem [#allocation12], %s877
        %p879 = pneg %p440
        %p880 = pneg %p437
        %p881 = scmp.lt.s32.totalorder %s48, 1
        %s882 = scalar_select %p881, %s48, 1
        %s883 = scalar_lea.vmem %s15, %s882
        %p884 = pneg %p466
        %p885 = pneg %p463
        %p886 = scmp.lt.s32.totalorder %s48, 1
        %s887 = scalar_select %p886, %s48, 1
        %s888 = scalar_lea.vmem %s16, %s887
        %p889 = pneg %p492
        %p890 = pneg %p489
        %p891 = pneg %p518
        %p892 = pneg %p515
        %s893 = sand.u32 %s505, 1
        %s894 = scalar_lea.sflag [#allocation5], %s893
        %s895 = sand.u32 %s505, 1
        %s896 = smul.addr %s895, 8
        %s897 = scalar_lea.vmem [#allocation14], %s896
        %p898 = scmp.lt.s32.totalorder %s48, 1
        %s899 = scalar_select %p898, %s48, 1
        %s900 = smul.addr %s899, 4
        %s901 = smul.addr %s900, 8
        %s902 = scalar_lea.vmem %s1, %s901
        %p903 = scmp.lt.s32.totalorder %s48, 1
        %s904 = scalar_select %p903, %s48, 1
        %s905 = smul.addr %s904, 4
        %s906 = smul.addr %s905, 8
        %s907 = scalar_lea.vmem %s3, %s906
        %p908 = scmp.lt.s32.totalorder %s48, 1
        %s909 = scalar_select %p908, %s48, 1
        %s910 = scalar_lea.vmem %s4, %s909
        %p911 = scmp.lt.s32.totalorder %s48, 1
        %s912 = scalar_select %p911, %s48, 1
        %s913 = smul.addr %s912, 4
        %s914 = smul.addr %s913, 8
        %s915 = scalar_lea.vmem %s5, %s914
        %p916 = scmp.lt.s32.totalorder %s48, 1
        %s917 = scalar_select %p916, %s48, 1
        %s918 = scalar_lea.vmem %s6, %s917
        %p919 = scmp.lt.s32.totalorder %s48, 1
        %s920 = scalar_select %p919, %s48, 1
        %s921 = scalar_lea.vmem %s9, %s920
        %p922 = scmp.lt.s32.totalorder %s48, 1
        %s923 = scalar_select %p922, %s48, 1
        %s924 = scalar_lea.vmem %s10, %s923
        %p925 = scmp.lt.s32.totalorder %s48, 1
        %s926 = scalar_select %p925, %s48, 1
        %s927 = scalar_lea.vmem %s12, %s926
        %p928 = scmp.lt.s32.totalorder %s48, 1
        %s929 = scalar_select %p928, %s48, 1
        %s930 = smul.addr %s929, 8
        %s931 = smul.addr %s930, 8
        %s932 = scalar_lea.vmem %s13, %s931
        %p933 = scmp.lt.s32.totalorder %s48, 1
        %s934 = scalar_select %p933, %s48, 1
        %s935 = scalar_lea.vmem %s15, %s934
        %p936 = scmp.lt.s32.totalorder %s48, 1
        %s937 = scalar_select %p936, %s48, 1
        %s938 = scalar_lea.vmem %s16, %s937
        %p939 = scmp.eq.s32.totalorder %s48, 0
        // Predicated region
        $region113: #{tpu_custom_call.1} parent=87 // pred_check
          %p940 = pneg %p939
        $region114: #{tpu_custom_call.1} parent=87 // pred_check_branch
          %942 = sbr.rel (%p940) target = $region116
        $region115: #{tpu_custom_call.1} parent=87 // pred_region
          %v943 = vld [vmem:[%s736] sm:$0xff]
          %vm944 = vcmask 261120
          %945 = vst.msk [vmem:[#allocation2] sm:$0xff] %vm944, %v943
        $region116: #{tpu_custom_call.1} parent=87 // pred_fallthru
          _
        %v946 = vld [vmem:[#allocation2] sm:$0xff]
        %v947 = vld [vmem:[%s902] sm:$0xff]
        %v948 = vld [vmem:[%s902 + $0x8] sm:$0xff]
        %v949 = vld [vmem:[%s902 + $0x10] sm:$0xff]
        %v950 = vld [vmem:[%s902 + $0x18] sm:$0xff]
        %v951 = vld [vmem:[%s745] sm:$0x1]
        %v953 = vperm.slane %v951, 0
        %vm955 = vcmask 261120
        %v957 = vsel %vm955, %v946, 0
        %959 = vmatpush.msra.mxu0 0.0
        %960 = vmatpush.msra.mxu0 0.0
        %961 = vmatpush.msra.mxu0 0.0
        %962 = vmatpush.msra.mxu0 0.0
        %963 = vmatpush.msra.mxu0 0.0
        %964 = vmatpush.msra.mxu0 0.0
        %965 = vmatpush.msra.mxu0 0.0
        %966 = vmatpush.msra.mxu0 0.0
        %967 = vmatpush.msra.mxu0 0.0
        %968 = vmatpush.msra.mxu0 0.0
        %969 = vmatpush.msra.mxu0 0.0
        %970 = vmatpush.msra.mxu0 0.0
        %971 = vmatpush.msra.mxu0 %v950
        %972 = vmatpush.msra.mxu0 %v949
        %973 = vmatpush.msra.mxu0 %v948
        %974 = vmatpush.msra.mxu0 %v947
        %975 = vmatmul.f32.gmra.mxu0 %v957
        %v976 = vpop.f32.mrf.mxu0
        %v977 = vadd.f32 %v953, %v976
        %978 = vdwg.mxu0
        %v979 = vmul.f32 %v977, 0.25
        %v980 = vld [vmem:[%s907] sm:$0xff]
        %v981 = vld [vmem:[%s907 + $0x8] sm:$0xff]
        %v982 = vld [vmem:[%s907 + $0x10] sm:$0xff]
        %v983 = vld [vmem:[%s907 + $0x18] sm:$0xff]
        %v984 = vld [vmem:[%s910] sm:$0x1]
        %v986 = vperm.slane %v984, 0
        %988 = vmatpush.msra.mxu0 0.0
        %989 = vmatpush.msra.mxu0 0.0
        %990 = vmatpush.msra.mxu0 0.0
        %991 = vmatpush.msra.mxu0 0.0
        %992 = vmatpush.msra.mxu0 0.0
        %993 = vmatpush.msra.mxu0 0.0
        %994 = vmatpush.msra.mxu0 0.0
        %995 = vmatpush.msra.mxu0 0.0
        %996 = vmatpush.msra.mxu0 0.0
        %997 = vmatpush.msra.mxu0 0.0
        %998 = vmatpush.msra.mxu0 0.0
        %999 = vmatpush.msra.mxu0 0.0
        %1000 = vmatpush.msra.mxu0 %v983
        %1001 = vmatpush.msra.mxu0 %v982
        %1002 = vmatpush.msra.mxu0 %v981
        %1003 = vmatpush.msra.mxu0 %v980
        %1004 = vmatmul.f32.gmra.mxu0 %v957
        %v1005 = vpop.f32.mrf.mxu0
        %v1006 = vadd.f32 %v986, %v1005
        %1007 = vdwg.mxu0
        %v1008 = vld [vmem:[%s915] sm:$0xff]
        %v1009 = vld [vmem:[%s915 + $0x8] sm:$0xff]
        %v1010 = vld [vmem:[%s915 + $0x10] sm:$0xff]
        %v1011 = vld [vmem:[%s915 + $0x18] sm:$0xff]
        %v1012 = vld [vmem:[%s918] sm:$0x1]
        %v1014 = vperm.slane %v1012, 0
        %1016 = vmatpush.msra.mxu0 0.0
        %1017 = vmatpush.msra.mxu0 0.0
        %1018 = vmatpush.msra.mxu0 0.0
        %1019 = vmatpush.msra.mxu0 0.0
        %1020 = vmatpush.msra.mxu0 0.0
        %1021 = vmatpush.msra.mxu0 0.0
        %1022 = vmatpush.msra.mxu0 0.0
        %1023 = vmatpush.msra.mxu0 0.0
        %1024 = vmatpush.msra.mxu0 0.0
        %1025 = vmatpush.msra.mxu0 0.0
        %1026 = vmatpush.msra.mxu0 0.0
        %1027 = vmatpush.msra.mxu0 0.0
        %1028 = vmatpush.msra.mxu0 %v1011
        %1029 = vmatpush.msra.mxu0 %v1010
        %1030 = vmatpush.msra.mxu0 %v1009
        %1031 = vmatpush.msra.mxu0 %v1008
        %1032 = vmatmul.f32.gmra.mxu0 %v957
        %v1033 = vpop.f32.mrf.mxu0
        %v1034 = vadd.f32 %v1014, %v1033
        %1035 = vdwg.mxu0
        %1037 = vrot.lane.b32.xlu0 %v979, 112
        %v1038 = vpop.permute.xlu0 %1037
        %1040 = vrot.lane.b32.xlu0 %v1006, 112
        %v1041 = vpop.permute.xlu0 %1040
        %1044 = vrot.lane.b32.xlu0 %v1034, 112
        %v1045 = vpop.permute.xlu0 %1044
        %1047 = vxpose.xlu0.b32.start [1/16] %v1006, 128
        %1048 = vxpose.xlu0.b32.cont [2/16] 0.0, 128
        %1049 = vxpose.xlu0.b32.cont [3/16] 0.0, 128
        %1050 = vxpose.xlu0.b32.cont [4/16] 0.0, 128
        %1051 = vxpose.xlu0.b32.cont [5/16] 0.0, 128
        %1052 = vxpose.xlu0.b32.cont [6/16] 0.0, 128
        %1053 = vxpose.xlu0.b32.cont [7/16] 0.0, 128
        %1054 = vxpose.xlu0.b32.cont [8/16] 0.0, 128
        %1055 = vxpose.xlu0.b32.cont [9/16] 0.0, 128
        %1056 = vxpose.xlu0.b32.cont [10/16] 0.0, 128
        %1057 = vxpose.xlu0.b32.cont [11/16] 0.0, 128
        %1058 = vxpose.xlu0.b32.cont [12/16] 0.0, 128
        %1059 = vxpose.xlu0.b32.cont [13/16] 0.0, 128
        %1060 = vxpose.xlu0.b32.cont [14/16] 0.0, 128
        %1061 = vxpose.xlu0.b32.cont [15/16] 0.0, 128
        %1062 = vxpose.xlu0.b32.end [16/16] 0.0, 128
        %v1063 = vpop.trf.xlu0
        %v1064 = vpop.trf.xlu0
        %v1065 = vpop.trf.xlu0
        %v1066 = vpop.trf.xlu0
        %v1067 = vpop.trf.xlu0
        %v1068 = vpop.trf.xlu0
        %v1069 = vpop.trf.xlu0
        %v1070 = vpop.trf.xlu0
        %v1071 = vpop.trf.xlu0
        %v1072 = vpop.trf.xlu0
        %v1073 = vpop.trf.xlu0
        %v1074 = vpop.trf.xlu0
        %v1075 = vpop.trf.xlu0
        %v1076 = vpop.trf.xlu0
        %v1077 = vpop.trf.xlu0
        %v1078 = vpop.trf.xlu0
        %1079 = vxpose.xlu0.b32.start [1/16] %v1041, 128
        %1080 = vxpose.xlu0.b32.cont [2/16] 0.0, 128
        %1081 = vxpose.xlu0.b32.cont [3/16] 0.0, 128
        %1082 = vxpose.xlu0.b32.cont [4/16] 0.0, 128
        %1083 = vxpose.xlu0.b32.cont [5/16] 0.0, 128
        %1084 = vxpose.xlu0.b32.cont [6/16] 0.0, 128
        %1085 = vxpose.xlu0.b32.cont [7/16] 0.0, 128
        %1086 = vxpose.xlu0.b32.cont [8/16] 0.0, 128
        %1087 = vxpose.xlu0.b32.cont [9/16] 0.0, 128
        %1088 = vxpose.xlu0.b32.cont [10/16] 0.0, 128
        %1089 = vxpose.xlu0.b32.cont [11/16] 0.0, 128
        %1090 = vxpose.xlu0.b32.cont [12/16] 0.0, 128
        %1091 = vxpose.xlu0.b32.cont [13/16] 0.0, 128
        %1092 = vxpose.xlu0.b32.cont [14/16] 0.0, 128
        %1093 = vxpose.xlu0.b32.cont [15/16] 0.0, 128
        %1094 = vxpose.xlu0.b32.end [16/16] 0.0, 128
        %v1095 = vpop.trf.xlu0
        %v1096 = vpop.trf.xlu0
        %v1097 = vpop.trf.xlu0
        %v1098 = vpop.trf.xlu0
        %v1099 = vpop.trf.xlu0
        %v1100 = vpop.trf.xlu0
        %v1101 = vpop.trf.xlu0
        %v1102 = vpop.trf.xlu0
        %v1103 = vpop.trf.xlu0
        %v1104 = vpop.trf.xlu0
        %v1105 = vpop.trf.xlu0
        %v1106 = vpop.trf.xlu0
        %v1107 = vpop.trf.xlu0
        %v1108 = vpop.trf.xlu0
        %v1109 = vpop.trf.xlu0
        %v1110 = vpop.trf.xlu0
        %vm1111 = vcmask 130048
        %v1112 = vsel %vm1111, %v979, 0
        %1114 = vmatpush.msra.mxu0 0.0
        %1115 = vmatpush.msra.mxu0 0.0
        %1116 = vmatpush.msra.mxu0 0.0
        %1117 = vmatpush.msra.mxu0 0.0
        %1118 = vmatpush.msra.mxu0 0.0
        %1119 = vmatpush.msra.mxu0 0.0
        %1120 = vmatpush.msra.mxu0 0.0
        %1121 = vmatpush.msra.mxu0 0.0
        %1122 = vmatpush.msra.mxu0 0.0
        %1123 = vmatpush.msra.mxu0 0.0
        %1124 = vmatpush.msra.mxu0 0.0
        %1125 = vmatpush.msra.mxu0 0.0
        %1126 = vmatpush.msra.mxu0 0.0
        %1127 = vmatpush.msra.mxu0 0.0
        %1128 = vmatpush.msra.mxu0 %v1064
        %1129 = vmatpush.msra.mxu0 %v1063
        %1130 = vmatmul.f32.gmra.mxu0 %v1112
        %v1131 = vpop.f32.mrf.mxu0
        %v1132 = vadd.f32 0.0, %v1131
        %1133 = vdwg.mxu0
        %v1134 = vsel %vm1111, %v1038, 0
        %1136 = vmatpush.msra.mxu0 0.0
        %1137 = vmatpush.msra.mxu0 0.0
        %1138 = vmatpush.msra.mxu0 0.0
        %1139 = vmatpush.msra.mxu0 0.0
        %1140 = vmatpush.msra.mxu0 0.0
        %1141 = vmatpush.msra.mxu0 0.0
        %1142 = vmatpush.msra.mxu0 0.0
        %1143 = vmatpush.msra.mxu0 0.0
        %1144 = vmatpush.msra.mxu0 0.0
        %1145 = vmatpush.msra.mxu0 0.0
        %1146 = vmatpush.msra.mxu0 0.0
        %1147 = vmatpush.msra.mxu0 0.0
        %1148 = vmatpush.msra.mxu0 0.0
        %1149 = vmatpush.msra.mxu0 0.0
        %1150 = vmatpush.msra.mxu0 %v1096
        %1151 = vmatpush.msra.mxu0 %v1095
        %1152 = vmatmul.f32.gmra.mxu0 %v1134
        %v1153 = vpop.f32.mrf.mxu0
        %v1154 = vadd.f32 0.0, %v1153
        %1155 = vdwg.mxu0
        %vm1156 = vcmask 64512
        %v1157 = vsel %vm1156, %v1132, -inf
        %1158 = vmax.xlane.f32.xlu0 %v1157
        %v1159 = vpop.xlane.xlu0 %1158
        %v1160 = vsel %vm1156, %v1154, -inf
        %1161 = vmax.xlane.f32.xlu0 %v1160
        %v1162 = vpop.xlane.xlu0 %1161
        %v1163 = vsub.f32 %v1132, %v1159
        %v1164 = vsub.f32 %v1154, %v1162
        %v1165 = vmul.f32 %v1163, 1.442695
        %v1166 = vpow.pop %v1165
        %v1167 = vmul.f32 %v1164, 1.442695
        %v1168 = vpow.pop %v1167
        %v1169 = vsel %vm1156, %v1166, 0.0
        %1170 = vadd.xlane.f32.xlu0 %v1169
        %v1171 = vpop.xlane.xlu0 %1170
        %v1172 = vsel %vm1156, %v1168, 0.0
        %1173 = vadd.xlane.f32.xlu0 %v1172
        %v1174 = vpop.xlane.xlu0 %1173
        %v1175 = vrcp.pop %v1171
        %v1176 = vrcp.pop %v1174
        %v1177 = vmul.f32 %v1166, %v1175
        %v1178 = vmul.f32 %v1168, %v1176
        %1179 = vxpose.xlu0.b32.start [1/16] %v1034, 128
        %1180 = vxpose.xlu0.b32.cont [2/16] 0.0, 128
        %1181 = vxpose.xlu0.b32.cont [3/16] 0.0, 128
        %1182 = vxpose.xlu0.b32.cont [4/16] 0.0, 128
        %1183 = vxpose.xlu0.b32.cont [5/16] 0.0, 128
        %1184 = vxpose.xlu0.b32.cont [6/16] 0.0, 128
        %1185 = vxpose.xlu0.b32.cont [7/16] 0.0, 128
        %1186 = vxpose.xlu0.b32.cont [8/16] 0.0, 128
        %1187 = vxpose.xlu0.b32.cont [9/16] 0.0, 128
        %1188 = vxpose.xlu0.b32.cont [10/16] 0.0, 128
        %1189 = vxpose.xlu0.b32.cont [11/16] 0.0, 128
        %1190 = vxpose.xlu0.b32.cont [12/16] 0.0, 128
        %1191 = vxpose.xlu0.b32.cont [13/16] 0.0, 128
        %1192 = vxpose.xlu0.b32.cont [14/16] 0.0, 128
        %1193 = vxpose.xlu0.b32.cont [15/16] 0.0, 128
        %1194 = vxpose.xlu0.b32.end [16/16] 0.0, 128
        %v1195 = vpop.trf.xlu0
        %v1196 = vpop.trf.xlu0
        %v1197 = vpop.trf.xlu0
        %v1198 = vpop.trf.xlu0
        %v1199 = vpop.trf.xlu0
        %v1200 = vpop.trf.xlu0
        %v1201 = vpop.trf.xlu0
        %v1202 = vpop.trf.xlu0
        %v1203 = vpop.trf.xlu0
        %v1204 = vpop.trf.xlu0
        %v1205 = vpop.trf.xlu0
        %v1206 = vpop.trf.xlu0
        %v1207 = vpop.trf.xlu0
        %v1208 = vpop.trf.xlu0
        %v1209 = vpop.trf.xlu0
        %v1210 = vpop.trf.xlu0
        %1211 = vxpose.xlu0.b32.start [1/16] %v1045, 128
        %1212 = vxpose.xlu0.b32.cont [2/16] 0.0, 128
        %1213 = vxpose.xlu0.b32.cont [3/16] 0.0, 128
        %1214 = vxpose.xlu0.b32.cont [4/16] 0.0, 128
        %1215 = vxpose.xlu0.b32.cont [5/16] 0.0, 128
        %1216 = vxpose.xlu0.b32.cont [6/16] 0.0, 128
        %1217 = vxpose.xlu0.b32.cont [7/16] 0.0, 128
        %1218 = vxpose.xlu0.b32.cont [8/16] 0.0, 128
        %1219 = vxpose.xlu0.b32.cont [9/16] 0.0, 128
        %1220 = vxpose.xlu0.b32.cont [10/16] 0.0, 128
        %1221 = vxpose.xlu0.b32.cont [11/16] 0.0, 128
        %1222 = vxpose.xlu0.b32.cont [12/16] 0.0, 128
        %1223 = vxpose.xlu0.b32.cont [13/16] 0.0, 128
        %1224 = vxpose.xlu0.b32.cont [14/16] 0.0, 128
        %1225 = vxpose.xlu0.b32.cont [15/16] 0.0, 128
        %1226 = vxpose.xlu0.b32.end [16/16] 0.0, 128
        %v1227 = vpop.trf.xlu0
        %v1228 = vpop.trf.xlu0
        %v1229 = vpop.trf.xlu0
        %v1230 = vpop.trf.xlu0
        %v1231 = vpop.trf.xlu0
        %v1232 = vpop.trf.xlu0
        %v1233 = vpop.trf.xlu0
        %v1234 = vpop.trf.xlu0
        %v1235 = vpop.trf.xlu0
        %v1236 = vpop.trf.xlu0
        %v1237 = vpop.trf.xlu0
        %v1238 = vpop.trf.xlu0
        %v1239 = vpop.trf.xlu0
        %v1240 = vpop.trf.xlu0
        %v1241 = vpop.trf.xlu0
        %v1242 = vpop.trf.xlu0
        %v1244 = vsel %vm1156, %v1195, 0
        %v1247 = vsel %vm1156, %v1196, 0
        %v1250 = vsel %vm1156, %v1177, 0
        %1252 = vmatpush.xpose.msra.mxu0 0.0
        %1253 = vmatpush.xpose.msra.mxu0 0.0
        %1254 = vmatpush.xpose.msra.mxu0 0.0
        %1255 = vmatpush.xpose.msra.mxu0 0.0
        %1256 = vmatpush.xpose.msra.mxu0 0.0
        %1257 = vmatpush.xpose.msra.mxu0 0.0
        %1258 = vmatpush.xpose.msra.mxu0 0.0
        %1259 = vmatpush.xpose.msra.mxu0 0.0
        %1260 = vmatpush.xpose.msra.mxu0 0.0
        %1261 = vmatpush.xpose.msra.mxu0 0.0
        %1262 = vmatpush.xpose.msra.mxu0 0.0
        %1263 = vmatpush.xpose.msra.mxu0 0.0
        %1264 = vmatpush.xpose.msra.mxu0 0.0
        %1265 = vmatpush.xpose.msra.mxu0 0.0
        %1266 = vmatpush.xpose.msra.mxu0 0.0
        %1267 = vmatpush.xpose.msra.mxu0 %v1250
        %1268 = vmatmul.f32.gmra.mxu0 %v1244
        %v1269 = vpop.f32.mrf.mxu0
        %v1270 = vadd.f32 0.0, %v1269
        %1271 = vmatmul.f32.gmra.mxu0 %v1247
        %v1272 = vpop.f32.mrf.mxu0
        %v1273 = vadd.f32 0.0, %v1272
        %1274 = vdwg.mxu0
        %v1276 = vsel %vm1156, %v1227, 0
        %v1279 = vsel %vm1156, %v1228, 0
        %v1282 = vsel %vm1156, %v1178, 0
        %1284 = vmatpush.xpose.msra.mxu0 0.0
        %1285 = vmatpush.xpose.msra.mxu0 0.0
        %1286 = vmatpush.xpose.msra.mxu0 0.0
        %1287 = vmatpush.xpose.msra.mxu0 0.0
        %1288 = vmatpush.xpose.msra.mxu0 0.0
        %1289 = vmatpush.xpose.msra.mxu0 0.0
        %1290 = vmatpush.xpose.msra.mxu0 0.0
        %1291 = vmatpush.xpose.msra.mxu0 0.0
        %1292 = vmatpush.xpose.msra.mxu0 0.0
        %1293 = vmatpush.xpose.msra.mxu0 0.0
        %1294 = vmatpush.xpose.msra.mxu0 0.0
        %1295 = vmatpush.xpose.msra.mxu0 0.0
        %1296 = vmatpush.xpose.msra.mxu0 0.0
        %1297 = vmatpush.xpose.msra.mxu0 0.0
        %1298 = vmatpush.xpose.msra.mxu0 0.0
        %1299 = vmatpush.xpose.msra.mxu0 %v1282
        %1300 = vmatmul.f32.gmra.mxu0 %v1276
        %v1301 = vpop.f32.mrf.mxu0
        %v1302 = vadd.f32 0.0, %v1301
        %1303 = vmatmul.f32.gmra.mxu0 %v1279
        %v1304 = vpop.f32.mrf.mxu0
        %v1305 = vadd.f32 0.0, %v1304
        %1306 = vdwg.mxu0
        %1307 = vxpose.xlu0.b32.start [1/16] %v1270, 128
        %1308 = vxpose.xlu0.b32.cont [2/16] %v1273, 128
        %1309 = vxpose.xlu0.b32.cont [3/16] 0.0, 128
        %1310 = vxpose.xlu0.b32.cont [4/16] 0.0, 128
        %1311 = vxpose.xlu0.b32.cont [5/16] 0.0, 128
        %1312 = vxpose.xlu0.b32.cont [6/16] 0.0, 128
        %1313 = vxpose.xlu0.b32.cont [7/16] 0.0, 128
        %1314 = vxpose.xlu0.b32.cont [8/16] 0.0, 128
        %1315 = vxpose.xlu0.b32.cont [9/16] 0.0, 128
        %1316 = vxpose.xlu0.b32.cont [10/16] 0.0, 128
        %1317 = vxpose.xlu0.b32.cont [11/16] 0.0, 128
        %1318 = vxpose.xlu0.b32.cont [12/16] 0.0, 128
        %1319 = vxpose.xlu0.b32.cont [13/16] 0.0, 128
        %1320 = vxpose.xlu0.b32.cont [14/16] 0.0, 128
        %1321 = vxpose.xlu0.b32.cont [15/16] 0.0, 128
        %1322 = vxpose.xlu0.b32.end [16/16] 0.0, 128
        %v1323 = vpop.trf.xlu0
        %v1324 = vpop.trf.xlu0
        %v1325 = vpop.trf.xlu0
        %v1326 = vpop.trf.xlu0
        %v1327 = vpop.trf.xlu0
        %v1328 = vpop.trf.xlu0
        %v1329 = vpop.trf.xlu0
        %v1330 = vpop.trf.xlu0
        %v1331 = vpop.trf.xlu0
        %v1332 = vpop.trf.xlu0
        %v1333 = vpop.trf.xlu0
        %v1334 = vpop.trf.xlu0
        %v1335 = vpop.trf.xlu0
        %v1336 = vpop.trf.xlu0
        %v1337 = vpop.trf.xlu0
        %v1338 = vpop.trf.xlu0
        %1339 = vxpose.xlu0.b32.start [1/16] %v1302, 128
        %1340 = vxpose.xlu0.b32.cont [2/16] %v1305, 128
        %1341 = vxpose.xlu0.b32.cont [3/16] 0.0, 128
        %1342 = vxpose.xlu0.b32.cont [4/16] 0.0, 128
        %1343 = vxpose.xlu0.b32.cont [5/16] 0.0, 128
        %1344 = vxpose.xlu0.b32.cont [6/16] 0.0, 128
        %1345 = vxpose.xlu0.b32.cont [7/16] 0.0, 128
        %1346 = vxpose.xlu0.b32.cont [8/16] 0.0, 128
        %1347 = vxpose.xlu0.b32.cont [9/16] 0.0, 128
        %1348 = vxpose.xlu0.b32.cont [10/16] 0.0, 128
        %1349 = vxpose.xlu0.b32.cont [11/16] 0.0, 128
        %1350 = vxpose.xlu0.b32.cont [12/16] 0.0, 128
        %1351 = vxpose.xlu0.b32.cont [13/16] 0.0, 128
        %1352 = vxpose.xlu0.b32.cont [14/16] 0.0, 128
        %1353 = vxpose.xlu0.b32.cont [15/16] 0.0, 128
        %1354 = vxpose.xlu0.b32.end [16/16] 0.0, 128
        %v1355 = vpop.trf.xlu0
        %v1356 = vpop.trf.xlu0
        %v1357 = vpop.trf.xlu0
        %v1358 = vpop.trf.xlu0
        %v1359 = vpop.trf.xlu0
        %v1360 = vpop.trf.xlu0
        %v1361 = vpop.trf.xlu0
        %v1362 = vpop.trf.xlu0
        %v1363 = vpop.trf.xlu0
        %v1364 = vpop.trf.xlu0
        %v1365 = vpop.trf.xlu0
        %v1366 = vpop.trf.xlu0
        %v1367 = vpop.trf.xlu0
        %v1368 = vpop.trf.xlu0
        %v1369 = vpop.trf.xlu0
        %v1370 = vpop.trf.xlu0
        %v1371 = vrot.slane %v1323, 4
        %vm1372 = vcmask 1047556
        %v1373 = vsel %vm1372, 0.0, %v1371
        %v1375 = vunpack.c.l.s4 1983009808
        %v1376 = vunpack.c.0.s8 %v1375
        %v1377 = vperm.slane %v1323, %v1376
        %v1379 = vunpack.c.l.s4 1983009808
        %v1380 = vunpack.c.0.s8 %v1379
        %v1381 = vperm.slane %v1373, %v1380
        %v1382 = vrot.slane %v1355, 4
        %v1383 = vsel %vm1372, 0.0, %v1382
        %v1385 = vunpack.c.l.s4 1983009808
        %v1386 = vunpack.c.0.s8 %v1385
        %v1387 = vperm.slane %v1355, %v1386
        %v1389 = vunpack.c.l.s4 1983009808
        %v1390 = vunpack.c.0.s8 %v1389
        %v1391 = vperm.slane %v1383, %v1390
        %v1392 = vrot.slane %v1387, 4
        %v1393 = vsel %vm1372, %v1392, %v1377
        %v1394 = vrot.slane %v1377, 4
        %v1395 = vsel %vm1372, %v1387, %v1394
        %v1397 = vunpack.c.l.s4 1934713408
        %v1398 = vunpack.c.0.s8 %v1397
        %v1399 = vperm.slane %v1393, %v1398
        %v1401 = vunpack.c.l.s4 1934713408
        %v1402 = vunpack.c.0.s8 %v1401
        %v1403 = vperm.slane %v1395, %v1402
        %v1404 = vrot.slane %v1391, 4
        %v1405 = vsel %vm1372, %v1404, %v1381
        %v1406 = vrot.slane %v1381, 4
        %v1407 = vsel %vm1372, %v1391, %v1406
        %v1409 = vunpack.c.l.s4 1934713408
        %v1410 = vunpack.c.0.s8 %v1409
        %v1411 = vperm.slane %v1405, %v1410
        %v1413 = vunpack.c.l.s4 1934713408
        %v1414 = vunpack.c.0.s8 %v1413
        %v1415 = vperm.slane %v1407, %v1414
        %v1416 = vrot.slane %v1399, 4
        %v1417 = vsel %vm1372, 0.0, %v1416
        %v1418 = vrot.slane %v1403, 4
        %v1419 = vsel %vm1372, 0.0, %v1418
        %v1420 = vrot.slane %v1411, 4
        %v1421 = vsel %vm1372, 0.0, %v1420
        %v1422 = vrot.slane %v1415, 4
        %v1423 = vsel %vm1372, 0.0, %v1422
        %v1424 = vsel %vm1372, %v1418, %v1399
        %v1426 = vunpack.c.l.s4 1983009808
        %v1427 = vunpack.c.0.s8 %v1426
        %v1428 = vperm.slane %v1424, %v1427
        %v1429 = vrot.slane %v1419, 4
        %v1430 = vsel %vm1372, %v1429, %v1417
        %v1432 = vunpack.c.l.s4 1983009808
        %v1433 = vunpack.c.0.s8 %v1432
        %v1434 = vperm.slane %v1430, %v1433
        %v1435 = vsel %vm1372, %v1422, %v1411
        %v1437 = vunpack.c.l.s4 1983009808
        %v1438 = vunpack.c.0.s8 %v1437
        %v1439 = vperm.slane %v1435, %v1438
        %v1440 = vrot.slane %v1423, 4
        %v1441 = vsel %vm1372, %v1440, %v1421
        %v1443 = vunpack.c.l.s4 1983009808
        %v1444 = vunpack.c.0.s8 %v1443
        %v1445 = vperm.slane %v1441, %v1444
        %v1446 = vrot.slane %v1434, 4
        %v1447 = vsel %vm1372, %v1446, %v1428
        %v1449 = vunpack.c.l.s4 1934713408
        %v1450 = vunpack.c.0.s8 %v1449
        %v1451 = vperm.slane %v1447, %v1450
        %v1452 = vrot.slane %v1445, 4
        %v1453 = vsel %vm1372, %v1452, %v1439
        %v1455 = vunpack.c.l.s4 1934713408
        %v1456 = vunpack.c.0.s8 %v1455
        %v1457 = vperm.slane %v1453, %v1456
        %v1458 = vrot.slane %v1457, 4
        %v1459 = vsel %vm1372, %v1458, %v1451
        %v1460 = vrot.slane %v1451, 4
        %v1461 = vsel %vm1372, %v1457, %v1460
        %1463 = vrot.lane.b32.xlu0 %v1461, 16
        %v1464 = vpop.permute.xlu0 %1463
        %v1466 = vsel %vm1111, %v1459, %v1464
        %v1467 = vld [vmem:[%s755] sm:$0xff]
        %v1468 = vld [vmem:[%s755 + $0x8] sm:$0xff]
        %v1469 = vld [vmem:[%s755 + $0x10] sm:$0xff]
        %v1470 = vld [vmem:[%s755 + $0x18] sm:$0xff]
        %v1471 = vld [vmem:[%s764] sm:$0x1]
        %v1473 = vperm.slane %v1471, 0
        %v1476 = vsel %vm955, %v1466, 0
        %1478 = vmatpush.msra.mxu0 0.0
        %1479 = vmatpush.msra.mxu0 0.0
        %1480 = vmatpush.msra.mxu0 0.0
        %1481 = vmatpush.msra.mxu0 0.0
        %1482 = vmatpush.msra.mxu0 0.0
        %1483 = vmatpush.msra.mxu0 0.0
        %1484 = vmatpush.msra.mxu0 0.0
        %1485 = vmatpush.msra.mxu0 0.0
        %1486 = vmatpush.msra.mxu0 0.0
        %1487 = vmatpush.msra.mxu0 0.0
        %1488 = vmatpush.msra.mxu0 0.0
        %1489 = vmatpush.msra.mxu0 0.0
        %1490 = vmatpush.msra.mxu0 %v1470
        %1491 = vmatpush.msra.mxu0 %v1469
        %1492 = vmatpush.msra.mxu0 %v1468
        %1493 = vmatpush.msra.mxu0 %v1467
        %1494 = vmatmul.f32.gmra.mxu0 %v1476
        %v1495 = vpop.f32.mrf.mxu0
        %v1496 = vadd.f32 %v1473, %v1495
        %1497 = vdwg.mxu0
        %v1498 = vadd.f32 %v1496, %v946
        %v1499 = vld [vmem:[%s921] sm:$0x1]
        %v1500 = vld [vmem:[%s924] sm:$0x1]
        %v1501 = vsel %vm955, %v1498, 0.0
        %1502 = vadd.xlane.f32.xlu0 %v1501
        %v1503 = vpop.xlane.xlu0 %1502
        %v1504 = vmul.f32 %v1503, 0.03125
        %v1505 = vmul.f32 %v1498, %v1498
        %v1506 = vsel %vm955, %v1505, 0.0
        %1507 = vadd.xlane.f32.xlu0 %v1506
        %v1508 = vpop.xlane.xlu0 %1507
        %v1509 = vmul.f32 %v1508, 0.03125
        %v1510 = vmul.f32 %v1504, %v1504
        %v1511 = vsub.f32 %v1509, %v1510
        %v1512 = vsub.f32 %v1498, %v1504
        %v1513 = vadd.f32 %v1511, 1e-05
        %v1514 = vrsqrt.pop %v1513
        %v1515 = vmul.f32 %v1514, %v1513
        %v1516 = vmul.f32 %v1515, %v1514
        %v1517 = vmul.f32 0.5, %v1516
        %v1518 = vsub.f32 1.5, %v1517
        %v1519 = vmul.f32 %v1514, %v1518
        %vm1520 = vweird.f32 %v1513
        %vm1521 = vweird.f32 %v1514
        %vm1522 = vmor %vm1520, %vm1521
        %v1523 = vsel %vm1522, %v1514, %v1519
        %v1524 = vmul.f32 %v1512, %v1523
        %v1526 = vperm.slane %v1499, 0
        %v1528 = vmul.f32 %v1524, %v1526
        %v1530 = vperm.slane %v1500, 0
        %v1532 = vadd.f32 %v1528, %v1530
        %v1533 = vld [vmem:[%s774] sm:$0xff]
        %v1534 = vld [vmem:[%s774 + $0x8] sm:$0xff]
        %v1535 = vld [vmem:[%s774 + $0x10] sm:$0xff]
        %v1536 = vld [vmem:[%s774 + $0x18] sm:$0xff]
        %v1537 = vld [vmem:[%s927] sm:$0x1]
        %v1539 = vperm.slane %v1537, 0
        %v1542 = vsel %vm955, %v1532, 0
        %1544 = vmatpush.msra.mxu0 0.0
        %1545 = vmatpush.msra.mxu0 0.0
        %1546 = vmatpush.msra.mxu0 0.0
        %1547 = vmatpush.msra.mxu0 0.0
        %1548 = vmatpush.msra.mxu0 0.0
        %1549 = vmatpush.msra.mxu0 0.0
        %1550 = vmatpush.msra.mxu0 0.0
        %1551 = vmatpush.msra.mxu0 0.0
        %1552 = vmatpush.msra.mxu0 0.0
        %1553 = vmatpush.msra.mxu0 0.0
        %1554 = vmatpush.msra.mxu0 0.0
        %1555 = vmatpush.msra.mxu0 0.0
        %1556 = vmatpush.msra.mxu0 %v1536
        %1557 = vmatpush.msra.mxu0 %v1535
        %1558 = vmatpush.msra.mxu0 %v1534
        %1559 = vmatpush.msra.mxu0 %v1533
        %1560 = vmatmul.f32.gmra.mxu0 %v1542
        %v1561 = vpop.f32.mrf.mxu0
        %v1562 = vadd.f32 %v1539, %v1561
        %1563 = vdwg.mxu0
        %v1564 = vmax.f32 %v1562, 0.0
        %v1565 = vld [vmem:[%s932] sm:$0xff]
        %v1566 = vld [vmem:[%s932 + $0x8] sm:$0xff]
        %v1567 = vld [vmem:[%s932 + $0x10] sm:$0xff]
        %v1568 = vld [vmem:[%s932 + $0x18] sm:$0xff]
        %v1569 = vld [vmem:[%s932 + $0x20] sm:$0xff]
        %v1570 = vld [vmem:[%s932 + $0x28] sm:$0xff]
        %v1571 = vld [vmem:[%s932 + $0x30] sm:$0xff]
        %v1572 = vld [vmem:[%s932 + $0x38] sm:$0xff]
        %v1573 = vld [vmem:[%s783] sm:$0x1]
        %v1575 = vperm.slane %v1573, 0
        %vm1577 = vcmask 523264
        %v1579 = vsel %vm1577, %v1564, 0
        %1581 = vmatpush.msra.mxu0 0.0
        %1582 = vmatpush.msra.mxu0 0.0
        %1583 = vmatpush.msra.mxu0 0.0
        %1584 = vmatpush.msra.mxu0 0.0
        %1585 = vmatpush.msra.mxu0 0.0
        %1586 = vmatpush.msra.mxu0 0.0
        %1587 = vmatpush.msra.mxu0 0.0
        %1588 = vmatpush.msra.mxu0 0.0
        %1589 = vmatpush.msra.mxu0 %v1572
        %1590 = vmatpush.msra.mxu0 %v1571
        %1591 = vmatpush.msra.mxu0 %v1570
        %1592 = vmatpush.msra.mxu0 %v1569
        %1593 = vmatpush.msra.mxu0 %v1568
        %1594 = vmatpush.msra.mxu0 %v1567
        %1595 = vmatpush.msra.mxu0 %v1566
        %1596 = vmatpush.msra.mxu0 %v1565
        %1597 = vmatmul.f32.gmra.mxu0 %v1579
        %v1598 = vpop.f32.mrf.mxu0
        %v1599 = vadd.f32 %v1575, %v1598
        %1600 = vdwg.mxu0
        %v1601 = vadd.f32 %v1599, %v1532
        %v1602 = vld [vmem:[%s935] sm:$0x1]
        %v1603 = vld [vmem:[%s938] sm:$0x1]
        %v1604 = vsel %vm955, %v1601, 0.0
        %1605 = vadd.xlane.f32.xlu0 %v1604
        %v1606 = vpop.xlane.xlu0 %1605
        %v1607 = vmul.f32 %v1606, 0.03125
        %v1608 = vmul.f32 %v1601, %v1601
        %v1609 = vsel %vm955, %v1608, 0.0
        %1610 = vadd.xlane.f32.xlu0 %v1609
        %v1611 = vpop.xlane.xlu0 %1610
        %v1612 = vmul.f32 %v1611, 0.03125
        %v1613 = vmul.f32 %v1607, %v1607
        %v1614 = vsub.f32 %v1612, %v1613
        %v1615 = vsub.f32 %v1601, %v1607
        %v1616 = vadd.f32 %v1614, 1e-05
        %v1617 = vrsqrt.pop %v1616
        %v1618 = vmul.f32 %v1617, %v1616
        %v1619 = vmul.f32 %v1618, %v1617
        %v1620 = vmul.f32 0.5, %v1619
        %v1621 = vsub.f32 1.5, %v1620
        %v1622 = vmul.f32 %v1617, %v1621
        %vm1623 = vweird.f32 %v1616
        %vm1624 = vweird.f32 %v1617
        %vm1625 = vmor %vm1623, %vm1624
        %v1626 = vsel %vm1625, %v1617, %v1622
        %v1627 = vmul.f32 %v1615, %v1626
        %v1629 = vperm.slane %v1602, 0
        %v1631 = vmul.f32 %v1627, %v1629
        %v1633 = vperm.slane %v1603, 0
        %v1635 = vadd.f32 %v1631, %v1633
        %1636 = vst.msk [vmem:[#allocation2] sm:$0xff] %vm955, %v1635
        %p1637 = scmp.eq.s32.totalorder %s48, 1
        // Predicated region
        $region117: #{tpu_custom_call.1} parent=87 // pred_check
          %p1638 = pneg %p1637
        $region118: #{tpu_custom_call.1} parent=87 // pred_check_branch
          %1640 = sbr.rel (%p1638) target = $region120
        $region119: #{tpu_custom_call.1} parent=87 // pred_region
          %1641 = vst.msk [vmem:[%s897] sm:$0xff] %vm955, %v1635
        $region120: #{tpu_custom_call.1} parent=87 // pred_fallthru
          _
        %s1642 = sand.u32 %s505, 1
        %s1643 = scalar_lea.sflag [#allocation5], %s1642
        %s1644 = sand.u32 %s505, 1
        %s1645 = smul.addr %s1644, 8
        %s1646 = scalar_lea.vmem [#allocation14], %s1645
        // Predicated region
        $region121: #{tpu_custom_call.1} parent=87 // pred_check
          %p1647 = pneg %p515
        $region122: #{tpu_custom_call.1} parent=87 // pred_check_branch
          %1649 = sbr.rel (%p1647) target = $region124
        $region123: #{tpu_custom_call.1} parent=87 // pred_region
          %1651 = vsyncadd %s1643, 0
          %s1652 = smul.addr %s47, 8
          %s1653 = scalar_lea.hbm %s17, %s1652
          %s1655 = sshll.u32 %s1646, 4
          %s1656 = int_to_ptr.vmem [resolvable:$true] %s1655
          %s1657 = sshll.u32 %s1653, 4
          %s1658 = int_to_ptr.hbm [resolvable:$true] %s1657
          %1660 = dma.vmem_to_hbm [thread:$0]  %s1656, 128, %s1658, %s1643
        $region124: #{tpu_custom_call.1} parent=87 // pred_fallthru
          _
      $region88: #{tpu_custom_call.1} parent=5 // pred_fallthru
        _
      %p1661 = scmp.le.s32.totalorder 2, %s38
      // Predicated region
      $region125: #{tpu_custom_call.1} parent=5 // pred_check
        %p1662 = pneg %p1661
      $region126: #{tpu_custom_call.1} parent=5 // pred_check_branch
        %1664 = sbr.rel (%p1662) target = $region128
      $region127: #{tpu_custom_call.1} parent=5 // pred_region
        %s1665 = ssub.s32 %s38, 2
        // Predicated region
        $region129: #{tpu_custom_call.1} parent=127 // pred_check
          %p1666 = pneg %p521
        $region130: #{tpu_custom_call.1} parent=127 // pred_check_branch
          %1668 = sbr.rel (%p1666) target = $region132
        $region131: #{tpu_custom_call.1} parent=127 // pred_region
          %s1669 = sand.u32 %s506, 1
          %s1670 = scalar_lea.sflag [#allocation5], %s1669
          %s1671 = sand.u32 %s506, 1
          %s1672 = smul.addr %s1671, 8
          %s1673 = scalar_lea.vmem [#allocation14], %s1672
          %1675 = dma.done %s1670, 128
        $region132: #{tpu_custom_call.1} parent=127 // pred_fallthru
          _
      $region128: #{tpu_custom_call.1} parent=5 // pred_fallthru
        _
    $region6: #{tpu_custom_call.1} parent=1 // loop_footer
      %s42 = sadd.s32 1, %s38
    $region7: #{tpu_custom_call.1} parent=1 // loop_footer_branch
      %37 = sbr.rel target = $region3
    $region8: #{tpu_custom_call.1} parent=1 // loop_exit
      _
    %1676 = vsyncpa [#allocation4], 1
    %s1677 = scalar_lea.sflag [#allocation4], 1
    %1678 = vsyncpa %s1677, 1
    %1679 = vsyncpa [#allocation7], 1
    %s1680 = scalar_lea.sflag [#allocation7], 1
    %1681 = vsyncpa %s1680, 1
    %1682 = vsyncpa [#allocation10], 1
    %s1683 = scalar_lea.sflag [#allocation10], 1
    %1684 = vsyncpa %s1683, 1
    %1685 = vsyncpa [#allocation13], 1
    %s1686 = scalar_lea.sflag [#allocation13], 1
    %1687 = vsyncpa %s1686, 1
    %1688 = vsyncpa [#allocation5], 1
    %s1689 = scalar_lea.sflag [#allocation5], 1
    %1690 = vsyncpa %s1689, 1

</llo_original>
